<compile_context>
chip_gen: v6e
topology: v6e:2x2x1
jax: 0.10.0
libtpu: 0.0.40
codegen_flags: <defaults>
</compile_context>

<pallas_src>
import jax
import jax.numpy as jnp
from jax.experimental import pallas as pl
from jax.experimental.pallas import tpu as pltpu


def _round_up(x, m):
    return (x + m - 1) // m * m


def _decoder_kernel(x_ref, w1_ref, b1_ref, w2_ref, b2_ref, o_ref):
    # x_ref: (tile_n, node_dim_p) tile of atom features (bf16 or f32).
    x = x_ref[...]
    # Linear 1 on the MXU (f32 accumulation) + f32 bias.
    h = jnp.dot(x, w1_ref[...], preferred_element_type=jnp.float32) + b1_ref[...]
    # SiLU in f32 (sigmoid handled by the EUP).
    h = h * jax.nn.sigmoid(h)
    # Linear 2 on the MXU (cast back to weight dtype) + f32 bias.
    out = jnp.dot(h.astype(w2_ref.dtype), w2_ref[...],
                  preferred_element_type=jnp.float32) + b2_ref[...]
    o_ref[...] = out.astype(o_ref.dtype)


def decoder_forward(h_atm, w1, b1, w2, b2, *, tile_n=1024):
    """Apply the 2-layer MLP decoder to node features h_atm: [N, node_dim]."""
    N, node_dim = h_atm.shape
    out_dim = w2.shape[1]
    assert w1.shape == (node_dim, node_dim)
    assert w2.shape[0] == node_dim

    # Lane-dense feature dims (multiples of 128 lanes).
    nd_p = _round_up(node_dim, 128)
    od_p = _round_up(out_dim, 128)

    # Row tile: multiple of 8 sublanes, no larger than the (8-rounded) problem.
    tile_n = max(8, _round_up(int(tile_n), 8))
    tile_n = min(tile_n, _round_up(N, 8))
    n_p = _round_up(N, tile_n)

    f32 = jnp.float32
    x_p = jnp.pad(h_atm, ((0, n_p - N), (0, nd_p - node_dim)))
    w1_p = jnp.pad(w1, ((0, nd_p - node_dim), (0, nd_p - node_dim)))
    w2_p = jnp.pad(w2, ((0, nd_p - node_dim), (0, od_p - out_dim)))
    b1_p = jnp.pad(b1.reshape(1, -1).astype(f32), ((0, 0), (0, nd_p - node_dim)))
    b2_p = jnp.pad(b2.reshape(1, -1).astype(f32), ((0, 0), (0, od_p - out_dim)))

    grid = (n_p // tile_n,)

    def build(single_buffer_consts):
        def const_spec(shape):
            idx = lambda i: (0,) * len(shape)
            if single_buffer_consts:
                # Constant-index operands don't need double buffering.
                return pl.BlockSpec(shape, idx, pipeline_mode=pl.Buffered(1))
            return pl.BlockSpec(shape, idx)

        return pl.pallas_call(
            _decoder_kernel,
            out_shape=jax.ShapeDtypeStruct((n_p, od_p), h_atm.dtype),
            grid_spec=pltpu.PrefetchScalarGridSpec(
                num_scalar_prefetch=0,
                grid=grid,
                in_specs=[
                    # Atom-feature tile marches over rows.
                    pl.BlockSpec((tile_n, nd_p), lambda i: (i, 0)),
                    # Weights / biases: full arrays, same block every step.
                    const_spec((nd_p, nd_p)),
                    const_spec((1, nd_p)),
                    const_spec((nd_p, od_p)),
                    const_spec((1, od_p)),
                ],
                out_specs=pl.BlockSpec((tile_n, od_p), lambda i: (i, 0)),
            ),
            compiler_params=pltpu.CompilerParams(
                dimension_semantics=("parallel",)),
        )

    try:
        out_p = build(True)(x_p, w1_p, b1_p, w2_p, b2_p)
        out_p = jax.block_until_ready(out_p)
    except Exception:
        # pipeline_mode=pl.Buffered not supported by this JAX build -> default buffering.
        out_p = build(False)(x_p, w1_p, b1_p, w2_p, b2_p)

    # Drop row padding and the lane padding of the output features.
    return out_p[:N, :out_dim]


def init_decoder_params(key, node_dim, out_dim, *, w_dtype=jnp.bfloat16):
    """Deterministic synthetic params (same math as the MLP's nn.Linear layers).

    Weights stored as [in_dim, out_dim] (transpose of torch storage, same math);
    weights in bf16 for the MXU path, biases kept in f32.
    """
    k1, k2, k3, k4 = jax.random.split(key, 4)
    s1 = 1.0 / jnp.sqrt(node_dim)
    w1 = jax.random.uniform(k1, (node_dim, node_dim), jnp.float32, -s1, s1).astype(w_dtype)
    b1 = jax.random.uniform(k2, (1, node_dim), jnp.float32, -s1, s1)
    w2 = jax.random.uniform(k3, (node_dim, out_dim), jnp.float32, -s1, s1).astype(w_dtype)
    b2 = jax.random.uniform(k4, (1, out_dim), jnp.float32, -s1, s1)
    return w1, b1, w2, b2


def reference_forward(h_atm, w1, b1, w2, b2):
    """Pure-JAX reference mirroring the kernel's numerics (bf16 matmuls, f32 acc/SiLU)."""
    h = jnp.dot(h_atm, w1, preferred_element_type=jnp.float32) + b1.astype(jnp.float32)
    h = h * jax.nn.sigmoid(h)
    out = jnp.dot(h.astype(w2.dtype), w2,
                  preferred_element_type=jnp.float32) + b2.astype(jnp.float32)
    return out.astype(h_atm.dtype)


if __name__ == "__main__":
    node_dim = 128   # hidden feature width
    out_dim = 64     # decoder output width
    n_atoms = 200    # number of nodes (deliberately not tile-aligned)

    key = jax.random.PRNGKey(0)
    k_x, k_p = jax.random.split(key)
    # Activations and weights in bf16 (halved HBM traffic + native MXU path);
    # accumulation, biases and SiLU stay in f32 inside the kernel.
    h_atm = jax.random.normal(k_x, (n_atoms, node_dim), jnp.float32).astype(jnp.bfloat16)
    w1, b1, w2, b2 = init_decoder_params(k_p, node_dim, out_dim)

    out = decoder_forward(h_atm, w1, b1, w2, b2)
    out = jax.block_until_ready(out)

    ref = reference_forward(h_atm, w1, b1, w2, b2)
    assert out.shape == (n_atoms, out_dim)
    err = jnp.max(jnp.abs(out.astype(jnp.float32) - ref.astype(jnp.float32)))
    assert jnp.allclose(out.astype(jnp.float32), ref.astype(jnp.float32),
                        atol=5e-2, rtol=5e-2), float(err)

    print("KERNEL_OK")
</pallas_src>

<mosaic_0001>
module attributes {stable_mosaic.version = 11 : i64} {
  func.func @_decoder_kernel(%arg0: i32, %arg1: memref<200x128xbf16, #tpu.memory_space<vmem>>, %arg2: memref<128x128xbf16, #tpu.memory_space<vmem>>, %arg3: memref<1x128xf32, #tpu.memory_space<vmem>>, %arg4: memref<128x128xbf16, #tpu.memory_space<vmem>>, %arg5: memref<1x128xf32, #tpu.memory_space<vmem>>, %arg6: memref<200x128xbf16, #tpu.memory_space<vmem>>) attributes {dimension_semantics = [#tpu.dimension_semantics<parallel>], iteration_bounds = array<i64: 1>, scalar_prefetch = 0 : i64, scratch_operands = 0 : i64, tpu.core_type = #tpu.core_type<tc>, window_params = [{transform_indices = @transform_0, window_bounds = array<i64: 200, 128>}, {pipeline_mode = #tpu.pipeline_mode<synchronous>, transform_indices = @transform_1, window_bounds = array<i64: 128, 128>}, {pipeline_mode = #tpu.pipeline_mode<synchronous>, transform_indices = @transform_2, window_bounds = array<i64: 1, 128>}, {pipeline_mode = #tpu.pipeline_mode<synchronous>, transform_indices = @transform_3, window_bounds = array<i64: 128, 128>}, {pipeline_mode = #tpu.pipeline_mode<synchronous>, transform_indices = @transform_4, window_bounds = array<i64: 1, 128>}, {transform_indices = @transform_5, window_bounds = array<i64: 200, 128>}]} {
    %c0 = arith.constant 0 : index
    %c0_0 = arith.constant 0 : index
    %0 = vector.load %arg1[%c0, %c0_0] : memref<200x128xbf16, #tpu.memory_space<vmem>>, vector<200x128xbf16>
    %c0_1 = arith.constant 0 : index
    %c0_2 = arith.constant 0 : index
    %1 = vector.load %arg2[%c0_1, %c0_2] : memref<128x128xbf16, #tpu.memory_space<vmem>>, vector<128x128xbf16>
    %cst = arith.constant dense<0.000000e+00> : vector<200x128xf32>
    %2 = tpu.matmul %0, %1, %cst {dimension_numbers = #tpu.dot_dimension_numbers<[1], [0], [0], [1], [0, 0, 1, 1], [], []>} : vector<200x128xbf16>, vector<128x128xbf16>, vector<200x128xf32> -> vector<200x128xf32>
    %c0_3 = arith.constant 0 : index
    %c0_4 = arith.constant 0 : index
    %3 = vector.load %arg3[%c0_3, %c0_4] : memref<1x128xf32, #tpu.memory_space<vmem>>, vector<1x128xf32>
    %4 = vector.broadcast %3 : vector<1x128xf32> to vector<200x128xf32>
    %5 = arith.addf %2, %4 : vector<200x128xf32>
    %6 = arith.negf %5 : vector<200x128xf32>
    %7 = math.exp %6 : vector<200x128xf32>
    %cst_5 = arith.constant 1.000000e+00 : f32
    %8 = vector.broadcast %cst_5 : f32 to vector<200x128xf32>
    %9 = arith.addf %8, %7 : vector<200x128xf32>
    %10 = arith.divf %8, %9 : vector<200x128xf32>
    %11 = arith.mulf %5, %10 : vector<200x128xf32>
    %12 = arith.truncf %11 : vector<200x128xf32> to vector<200x128xbf16>
    %c0_6 = arith.constant 0 : index
    %c0_7 = arith.constant 0 : index
    %13 = vector.load %arg4[%c0_6, %c0_7] : memref<128x128xbf16, #tpu.memory_space<vmem>>, vector<128x128xbf16>
    %cst_8 = arith.constant dense<0.000000e+00> : vector<200x128xf32>
    %14 = tpu.matmul %12, %13, %cst_8 {dimension_numbers = #tpu.dot_dimension_numbers<[1], [0], [0], [1], [0, 0, 1, 1], [], []>} : vector<200x128xbf16>, vector<128x128xbf16>, vector<200x128xf32> -> vector<200x128xf32>
    %c0_9 = arith.constant 0 : index
    %c0_10 = arith.constant 0 : index
    %15 = vector.load %arg5[%c0_9, %c0_10] : memref<1x128xf32, #tpu.memory_space<vmem>>, vector<1x128xf32>
    %16 = vector.broadcast %15 : vector<1x128xf32> to vector<200x128xf32>
    %17 = arith.addf %14, %16 : vector<200x128xf32>
    %18 = arith.truncf %17 : vector<200x128xf32> to vector<200x128xbf16>
    %c0_11 = arith.constant 0 : index
    %c0_12 = arith.constant 0 : index
    %19 = vector.load %arg6[%c0_11, %c0_12] : memref<200x128xbf16, #tpu.memory_space<vmem>>, vector<200x128xbf16>
    tpu.vector_store %arg6[%c0_11, %c0_12], %18 {strides = array<i32>} : memref<200x128xbf16, #tpu.memory_space<vmem>>, vector<200x128xbf16>,
    return
  }
  func.func @transform_0(%arg0: i32) -> (i32, i32) {
    %c0_i32 = arith.constant 0 : i32
    %c0_i32_0 = arith.constant 0 : i32
    return %arg0, %c0_i32 : i32, i32
  }
  func.func @transform_1(%arg0: i32) -> (i32, i32) {
    %c0_i32 = arith.constant 0 : i32
    %c0_i32_0 = arith.constant 0 : i32
    %c0_i32_1 = arith.constant 0 : i32
    return %c0_i32, %c0_i32_0 : i32, i32
  }
  func.func @transform_2(%arg0: i32) -> (i32, i32) {
    %c0_i32 = arith.constant 0 : i32
    %c0_i32_0 = arith.constant 0 : i32
    %c0_i32_1 = arith.constant 0 : i32
    return %c0_i32, %c0_i32_0 : i32, i32
  }
  func.func @transform_3(%arg0: i32) -> (i32, i32) {
    %c0_i32 = arith.constant 0 : i32
    %c0_i32_0 = arith.constant 0 : i32
    %c0_i32_1 = arith.constant 0 : i32
    return %c0_i32, %c0_i32_0 : i32, i32
  }
  func.func @transform_4(%arg0: i32) -> (i32, i32) {
    %c0_i32 = arith.constant 0 : i32
    %c0_i32_0 = arith.constant 0 : i32
    %c0_i32_1 = arith.constant 0 : i32
    return %c0_i32, %c0_i32_0 : i32, i32
  }
  func.func @transform_5(%arg0: i32) -> (i32, i32) {
    %c0_i32 = arith.constant 0 : i32
    %c0_i32_0 = arith.constant 0 : i32
    return %arg0, %c0_i32 : i32, i32
  }
}

module attributes {stable_mosaic.version = 11 : i64} {
  func.func @_decoder_kernel(%arg0: i32, %arg1: memref<200x128xbf16, #tpu.memory_space<vmem>>, %arg2: memref<128x128xbf16, #tpu.memory_space<vmem>>, %arg3: memref<1x128xf32, #tpu.memory_space<vmem>>, %arg4: memref<128x128xbf16, #tpu.memory_space<vmem>>, %arg5: memref<1x128xf32, #tpu.memory_space<vmem>>, %arg6: memref<200x128xbf16, #tpu.memory_space<vmem>>) attributes {dimension_semantics = [#tpu.dimension_semantics<parallel>], iteration_bounds = array<i64: 1>, scalar_prefetch = 0 : i64, scratch_operands = 0 : i64, tpu.core_type = #tpu.core_type<tc>, window_params = [{transform_indices = @transform_0, window_bounds = array<i64: 200, 128>}, {pipeline_mode = #tpu.pipeline_mode<synchronous>, transform_indices = @transform_1, window_bounds = array<i64: 128, 128>}, {pipeline_mode = #tpu.pipeline_mode<synchronous>, transform_indices = @transform_2, window_bounds = array<i64: 1, 128>}, {pipeline_mode = #tpu.pipeline_mode<synchronous>, transform_indices = @transform_3, window_bounds = array<i64: 128, 128>}, {pipeline_mode = #tpu.pipeline_mode<synchronous>, transform_indices = @transform_4, window_bounds = array<i64: 1, 128>}, {transform_indices = @transform_5, window_bounds = array<i64: 200, 128>}]} {
    %c0 = arith.constant 0 : index
    %c0_0 = arith.constant 0 : index
    %0 = vector.load %arg1[%c0, %c0_0] : memref<200x128xbf16, #tpu.memory_space<vmem>>, vector<200x128xbf16>
    %c0_1 = arith.constant 0 : index
    %c0_2 = arith.constant 0 : index
    %1 = vector.load %arg2[%c0_1, %c0_2] : memref<128x128xbf16, #tpu.memory_space<vmem>>, vector<128x128xbf16>
    %cst = arith.constant dense<0.000000e+00> : vector<200x128xf32>
    %2 = tpu.matmul %0, %1, %cst {dimension_numbers = #tpu.dot_dimension_numbers<[1], [0], [0], [1], [0, 0, 1, 1], [], []>} : vector<200x128xbf16>, vector<128x128xbf16>, vector<200x128xf32> -> vector<200x128xf32>
    %c0_3 = arith.constant 0 : index
    %c0_4 = arith.constant 0 : index
    %3 = vector.load %arg3[%c0_3, %c0_4] : memref<1x128xf32, #tpu.memory_space<vmem>>, vector<1x128xf32>
    %4 = vector.broadcast %3 : vector<1x128xf32> to vector<200x128xf32>
    %5 = arith.addf %2, %4 : vector<200x128xf32>
    %6 = arith.negf %5 : vector<200x128xf32>
    %7 = math.exp %6 : vector<200x128xf32>
    %cst_5 = arith.constant 1.000000e+00 : f32
    %8 = vector.broadcast %cst_5 : f32 to vector<200x128xf32>
    %9 = arith.addf %8, %7 : vector<200x128xf32>
    %10 = arith.divf %8, %9 : vector<200x128xf32>
    %11 = arith.mulf %5, %10 : vector<200x128xf32>
    %12 = arith.truncf %11 : vector<200x128xf32> to vector<200x128xbf16>
    %c0_6 = arith.constant 0 : index
    %c0_7 = arith.constant 0 : index
    %13 = vector.load %arg4[%c0_6, %c0_7] : memref<128x128xbf16, #tpu.memory_space<vmem>>, vector<128x128xbf16>
    %cst_8 = arith.constant dense<0.000000e+00> : vector<200x128xf32>
    %14 = tpu.matmul %12, %13, %cst_8 {dimension_numbers = #tpu.dot_dimension_numbers<[1], [0], [0], [1], [0, 0, 1, 1], [], []>} : vector<200x128xbf16>, vector<128x128xbf16>, vector<200x128xf32> -> vector<200x128xf32>
    %c0_9 = arith.constant 0 : index
    %c0_10 = arith.constant 0 : index
    %15 = vector.load %arg5[%c0_9, %c0_10] : memref<1x128xf32, #tpu.memory_space<vmem>>, vector<1x128xf32>
    %16 = vector.broadcast %15 : vector<1x128xf32> to vector<200x128xf32>
    %17 = arith.addf %14, %16 : vector<200x128xf32>
    %18 = arith.truncf %17 : vector<200x128xf32> to vector<200x128xbf16>
    %c0_11 = arith.constant 0 : index
    %c0_12 = arith.constant 0 : index
    %19 = vector.load %arg6[%c0_11, %c0_12] : memref<200x128xbf16, #tpu.memory_space<vmem>>, vector<200x128xbf16>
    tpu.vector_store %arg6[%c0_11, %c0_12], %18 {strides = array<i32>} : memref<200x128xbf16, #tpu.memory_space<vmem>>, vector<200x128xbf16>,
    return
  }
  func.func @transform_0(%arg0: i32) -> (i32, i32) {
    %c0_i32 = arith.constant 0 : i32
    %c0_i32_0 = arith.constant 0 : i32
    return %arg0, %c0_i32 : i32, i32
  }
  func.func @transform_1(%arg0: i32) -> (i32, i32) {
    %c0_i32 = arith.constant 0 : i32
    %c0_i32_0 = arith.constant 0 : i32
    %c0_i32_1 = arith.constant 0 : i32
    return %c0_i32, %c0_i32_0 : i32, i32
  }
  func.func @transform_2(%arg0: i32) -> (i32, i32) {
    %c0_i32 = arith.constant 0 : i32
    %c0_i32_0 = arith.constant 0 : i32
    %c0_i32_1 = arith.constant 0 : i32
    return %c0_i32, %c0_i32_0 : i32, i32
  }
  func.func @transform_3(%arg0: i32) -> (i32, i32) {
    %c0_i32 = arith.constant 0 : i32
    %c0_i32_0 = arith.constant 0 : i32
    %c0_i32_1 = arith.constant 0 : i32
    return %c0_i32, %c0_i32_0 : i32, i32
  }
  func.func @transform_4(%arg0: i32) -> (i32, i32) {
    %c0_i32 = arith.constant 0 : i32
    %c0_i32_0 = arith.constant 0 : i32
    %c0_i32_1 = arith.constant 0 : i32
    return %c0_i32, %c0_i32_0 : i32, i32
  }
  func.func @transform_5(%arg0: i32) -> (i32, i32) {
    %c0_i32 = arith.constant 0 : i32
    %c0_i32_0 = arith.constant 0 : i32
    return %arg0, %c0_i32 : i32, i32
  }
}

</mosaic_0001>

<llo_original>
// kernel: tpu_custom_call.1
$region0: #{tpu_custom_call.1}
  #allocation0 [shape = 'u32[]', space=smem, size = 0x4, offset = 0x4, fixed_abs, tag = 'smem constant byte address 0x4 - core index']
  #allocation1 [shape = 'u32[144,128]{1,0:T(1,128)}', space=vmem, size = 0x12000, scoped, tag = 'internal scratch']
  %s0 = inlined_call_operand.hbm [shape: bf16[200,128], index: 0, kind: input, shape index: {}]
  %s1 = inlined_call_operand.hbm [shape: bf16[128,128], index: 1, kind: input, shape index: {}]
  %s2 = inlined_call_operand.vmem [shape: f32[1,128], index: 2, kind: input, shape index: {}]
  %s3 = inlined_call_operand.hbm [shape: bf16[128,128], index: 3, kind: input, shape index: {}]
  %s4 = inlined_call_operand.vmem [shape: f32[1,128], index: 4, kind: input, shape index: {}]
  %s5 = inlined_call_operand.hbm [shape: bf16[200,128], index: 5, kind: output, shape index: {}]
  %s6 = sld [smem:[#allocation0]]
  $region42: #{tpu_custom_call.1} parent=0
    _
  %s8 = ssub.s32 1, %s6
  %s9 = scalar_select 0, %s8, %s6
  $region1: #{tpu_custom_call.1} parent=0
    #allocation2 [shape = 'u8[51200]{0}', space=vmem, size = 0xc800, scoped, tag = 'input window, operand 0, single buffered']
    #allocation3 [shape = 's32[1]{0}', space=sflag, size = 0x4, scoped, tag = 'scoped memory for tpu_custom_call.1']
    #allocation4 [shape = 's32[1]{0}', space=sflag, size = 0x4, scoped, tag = 'scoped memory for tpu_custom_call.1']
    #allocation5 [shape = 'u8[32768]{0}', space=vmem, size = 0x8000, scoped, tag = 'input window, operand 1, single buffered']
    #allocation6 [shape = 's32[1]{0}', space=sflag, size = 0x4, scoped, tag = 'scoped memory for tpu_custom_call.1']
    #allocation7 [shape = 'u8[32768]{0}', space=vmem, size = 0x8000, scoped, tag = 'input window, operand 3, single buffered']
    #allocation8 [shape = 'u8[51200]{0}', space=vmem, size = 0xc800, scoped, tag = 'output window, operand 0, single buffered']
    %10 = vsyncpa [#allocation3], 0
    %11 = vsyncpa [#allocation6], 0
    %12 = vsyncpa [#allocation4], 0
    // Predicated region
    $region2: #{tpu_custom_call.1} parent=1 // pred_check
      _
    $region3: #{tpu_custom_call.1} parent=1 // pred_check_branch
      %14 = sbr.rel (0) target = $region5
    $region4: #{tpu_custom_call.1} parent=1 // pred_region
      %s16 = ssub.s32 1600, 1600
      %17 = vsyncadd [#allocation3], %s16
      %s18 = sshll.u32 [#allocation2], 4
      %s19 = int_to_ptr.vmem [resolvable:$true] %s18
      %24 = dma.hbm_to_vmem [thread:$0]  %s0, 1600, %s19, [#allocation3], 64, 64, 4
    $region5: #{tpu_custom_call.1} parent=1 // pred_fallthru
      _
    // Predicated region
    $region6: #{tpu_custom_call.1} parent=1 // pred_check
      _
    $region7: #{tpu_custom_call.1} parent=1 // pred_check_branch
      %26 = sbr.rel (0) target = $region9
    $region8: #{tpu_custom_call.1} parent=1 // pred_region
      %s28 = ssub.s32 1024, 1024
      %29 = vsyncadd [#allocation6], %s28
      %s30 = sshll.u32 [#allocation5], 4
      %s31 = int_to_ptr.vmem [resolvable:$true] %s30
      %36 = dma.hbm_to_vmem [thread:$0]  %s1, 1024, %s31, [#allocation6], 64, 64, 4
    $region9: #{tpu_custom_call.1} parent=1 // pred_fallthru
      _
    // Predicated region
    $region10: #{tpu_custom_call.1} parent=1 // pred_check
      _
    $region11: #{tpu_custom_call.1} parent=1 // pred_check_branch
      %38 = sbr.rel (0) target = $region13
    $region12: #{tpu_custom_call.1} parent=1 // pred_region
      _
    $region13: #{tpu_custom_call.1} parent=1 // pred_fallthru
      _
    // Predicated region
    $region14: #{tpu_custom_call.1} parent=1 // pred_check
      _
    $region15: #{tpu_custom_call.1} parent=1 // pred_check_branch
      %40 = sbr.rel (0) target = $region17
    $region16: #{tpu_custom_call.1} parent=1 // pred_region
      %s42 = ssub.s32 1024, 1024
      %43 = vsyncadd [#allocation6], %s42
      %s44 = sshll.u32 [#allocation7], 4
      %s45 = int_to_ptr.vmem [resolvable:$true] %s44
      %50 = dma.hbm_to_vmem [thread:$0]  %s3, 1024, %s45, [#allocation6], 64, 64, 4
    $region17: #{tpu_custom_call.1} parent=1 // pred_fallthru
      _
    // Predicated region
    $region18: #{tpu_custom_call.1} parent=1 // pred_check
      _
    $region19: #{tpu_custom_call.1} parent=1 // pred_check_branch
      %52 = sbr.rel (0) target = $region21
    $region20: #{tpu_custom_call.1} parent=1 // pred_region
      _
    $region21: #{tpu_custom_call.1} parent=1 // pred_fallthru
      _
    // Predicated region
    $region22: #{tpu_custom_call.1} parent=1 // pred_check
      _
    $region23: #{tpu_custom_call.1} parent=1 // pred_check_branch
      %54 = sbr.rel (0) target = $region25
    $region24: #{tpu_custom_call.1} parent=1 // pred_region
      %55 = dma.done [#allocation3], 1600
    $region25: #{tpu_custom_call.1} parent=1 // pred_fallthru
      _
    // Predicated region
    $region26: #{tpu_custom_call.1} parent=1 // pred_check
      _
    $region27: #{tpu_custom_call.1} parent=1 // pred_check_branch
      %57 = sbr.rel (0) target = $region29
    $region28: #{tpu_custom_call.1} parent=1 // pred_region
      %58 = dma.done [#allocation6], 1024
    $region29: #{tpu_custom_call.1} parent=1 // pred_fallthru
      _
    // Predicated region
    $region30: #{tpu_custom_call.1} parent=1 // pred_check
      _
    $region31: #{tpu_custom_call.1} parent=1 // pred_check_branch
      %60 = sbr.rel (0) target = $region33
    $region32: #{tpu_custom_call.1} parent=1 // pred_region
      %61 = dma.done [#allocation6], 1024
    $region33: #{tpu_custom_call.1} parent=1 // pred_fallthru
      _
    %v63 = vld [vmem:[#allocation2] sm:$0xf]
    %v64 = vld [vmem:[#allocation2 + $0x4] sm:$0xf]
    %v65 = vld [vmem:[#allocation2 + $0x8] sm:$0xf]
    %v66 = vld [vmem:[#allocation2 + $0xc] sm:$0xf]
    %v67 = vld [vmem:[#allocation2 + $0x10] sm:$0xf]
    %v68 = vld [vmem:[#allocation2 + $0x14] sm:$0xf]
    %v69 = vld [vmem:[#allocation2 + $0x18] sm:$0xf]
    %v70 = vld [vmem:[#allocation2 + $0x1c] sm:$0xf]
    %v71 = vld [vmem:[#allocation2 + $0x20] sm:$0xf]
    %v72 = vld [vmem:[#allocation2 + $0x24] sm:$0xf]
    %v73 = vld [vmem:[#allocation2 + $0x28] sm:$0xf]
    %v74 = vld [vmem:[#allocation2 + $0x2c] sm:$0xf]
    %v75 = vld [vmem:[#allocation2 + $0x30] sm:$0xf]
    %v76 = vld [vmem:[#allocation2 + $0x34] sm:$0xf]
    %v77 = vld [vmem:[#allocation2 + $0x38] sm:$0xf]
    %v78 = vld [vmem:[#allocation2 + $0x3c] sm:$0xf]
    %v79 = vld [vmem:[#allocation2 + $0x40] sm:$0xf]
    %v80 = vld [vmem:[#allocation2 + $0x44] sm:$0xf]
    %v81 = vld [vmem:[#allocation2 + $0x48] sm:$0xf]
    %v82 = vld [vmem:[#allocation2 + $0x4c] sm:$0xf]
    %v83 = vld [vmem:[#allocation2 + $0x50] sm:$0xf]
    %v84 = vld [vmem:[#allocation2 + $0x54] sm:$0xf]
    %v85 = vld [vmem:[#allocation2 + $0x58] sm:$0xf]
    %v86 = vld [vmem:[#allocation2 + $0x5c] sm:$0xf]
    %v87 = vld [vmem:[#allocation2 + $0x60] sm:$0xf]
    %v88 = vld [vmem:[#allocation5] sm:$0xf]
    %v89 = vld [vmem:[#allocation5 + $0x4] sm:$0xf]
    %v90 = vld [vmem:[#allocation5 + $0x8] sm:$0xf]
    %v91 = vld [vmem:[#allocation5 + $0xc] sm:$0xf]
    %v92 = vld [vmem:[#allocation5 + $0x10] sm:$0xf]
    %v93 = vld [vmem:[#allocation5 + $0x14] sm:$0xf]
    %v94 = vld [vmem:[#allocation5 + $0x18] sm:$0xf]
    %v95 = vld [vmem:[#allocation5 + $0x1c] sm:$0xf]
    %v96 = vld [vmem:[#allocation5 + $0x20] sm:$0xf]
    %v97 = vld [vmem:[#allocation5 + $0x24] sm:$0xf]
    %v98 = vld [vmem:[#allocation5 + $0x28] sm:$0xf]
    %v99 = vld [vmem:[#allocation5 + $0x2c] sm:$0xf]
    %v100 = vld [vmem:[#allocation5 + $0x30] sm:$0xf]
    %v101 = vld [vmem:[#allocation5 + $0x34] sm:$0xf]
    %v102 = vld [vmem:[#allocation5 + $0x38] sm:$0xf]
    %v103 = vld [vmem:[#allocation5 + $0x3c] sm:$0xf]
    %v104 = vld [vmem:[%s2] sm:$0x1]
    %v106 = vlaneseq
    %v107 = vshrl.u32 %v106, 7
    %v108 = vsub.s32 0, %v107
    %v109 = vrot.slane %v104, %v108
    %v136 = vunpack.c.l.b16 %v63
    %v137 = vunpack.c.l.b16 %v64
    %v138 = vunpack.c.l.b16 %v65
    %v139 = vunpack.c.l.b16 %v66
    %v140 = vunpack.c.l.b16 %v67
    %v141 = vunpack.c.l.b16 %v68
    %v142 = vunpack.c.l.b16 %v69
    %v143 = vunpack.c.l.b16 %v70
    %v144 = vunpack.c.l.b16 %v71
    %v145 = vunpack.c.l.b16 %v72
    %v146 = vunpack.c.l.b16 %v73
    %v147 = vunpack.c.l.b16 %v74
    %v148 = vunpack.c.l.b16 %v75
    %v149 = vunpack.c.l.b16 %v76
    %v150 = vunpack.c.l.b16 %v77
    %v151 = vunpack.c.l.b16 %v78
    %v152 = vunpack.c.l.b16 %v79
    %v153 = vunpack.c.l.b16 %v80
    %v154 = vunpack.c.l.b16 %v81
    %v155 = vunpack.c.l.b16 %v82
    %v156 = vunpack.c.l.b16 %v83
    %v157 = vunpack.c.l.b16 %v84
    %v158 = vunpack.c.l.b16 %v85
    %v159 = vunpack.c.l.b16 %v86
    %v160 = vunpack.c.l.b16 %v87
    %v161 = vpack.c.b16 %v137, %v136
    %v162 = vpack.c.b16 %v139, %v138
    %v163 = vpack.c.b16 %v141, %v140
    %v164 = vpack.c.b16 %v143, %v142
    %v165 = vpack.c.b16 %v145, %v144
    %v166 = vpack.c.b16 %v147, %v146
    %v167 = vpack.c.b16 %v149, %v148
    %v168 = vpack.c.b16 %v151, %v150
    %v169 = vpack.c.b16 %v153, %v152
    %v170 = vpack.c.b16 %v155, %v154
    %v171 = vpack.c.b16 %v157, %v156
    %v172 = vpack.c.b16 %v159, %v158
    %v173 = vpack.c.b16 %v160, %v160
    %v203 = vunpack.c.l.b16 %v88
    %v204 = vunpack.c.l.b16 %v89
    %v205 = vunpack.c.l.b16 %v90
    %v206 = vunpack.c.l.b16 %v91
    %v207 = vunpack.c.l.b16 %v92
    %v208 = vunpack.c.l.b16 %v93
    %v209 = vunpack.c.l.b16 %v94
    %v210 = vunpack.c.l.b16 %v95
    %v211 = vunpack.c.l.b16 %v96
    %v212 = vunpack.c.l.b16 %v97
    %v213 = vunpack.c.l.b16 %v98
    %v214 = vunpack.c.l.b16 %v99
    %v215 = vunpack.c.l.b16 %v100
    %v216 = vunpack.c.l.b16 %v101
    %v217 = vunpack.c.l.b16 %v102
    %v218 = vunpack.c.l.b16 %v103
    %v219 = vpack.c.b16 %v204, %v203
    %v220 = vpack.c.b16 %v206, %v205
    %v221 = vpack.c.b16 %v208, %v207
    %v222 = vpack.c.b16 %v210, %v209
    %v223 = vpack.c.b16 %v212, %v211
    %v224 = vpack.c.b16 %v214, %v213
    %v225 = vpack.c.b16 %v216, %v215
    %v226 = vpack.c.b16 %v218, %v217
    %235 = vmatprep.subr.bf16.mxu0 0
    %236 = vmatpush1.bf16.msra.mxu0 %v226
    %237 = vmatprep.subr.bf16.mxu0 0
    %238 = vmatpush1.bf16.msra.mxu0 %v225
    %239 = vmatprep.subr.bf16.mxu0 0
    %240 = vmatpush1.bf16.msra.mxu0 %v224
    %241 = vmatprep.subr.bf16.mxu0 0
    %242 = vmatpush1.bf16.msra.mxu0 %v223
    %243 = vmatprep.subr.bf16.mxu0 0
    %244 = vmatpush1.bf16.msra.mxu0 %v222
    %245 = vmatprep.subr.bf16.mxu0 0
    %246 = vmatpush1.bf16.msra.mxu0 %v221
    %247 = vmatprep.subr.bf16.mxu0 0
    %248 = vmatpush1.bf16.msra.mxu0 %v220
    %249 = vmatprep.subr.bf16.mxu0 0
    %250 = vmatpush1.bf16.msra.mxu0 %v219
    %251 = vmatprep.subr.bf16.mxu0 0
    %252 = vmatpush2.bf16.msra.mxu0 0
    %253 = vmatprep.subr.bf16.mxu0 0
    %254 = vmatpush2.bf16.msra.mxu0 0
    %255 = vmatprep.subr.bf16.mxu0 0
    %256 = vmatpush2.bf16.msra.mxu0 0
    %257 = vmatprep.subr.bf16.mxu0 0
    %258 = vmatpush2.bf16.msra.mxu0 0
    %259 = vmatprep.subr.bf16.mxu0 0
    %260 = vmatpush2.bf16.msra.mxu0 0
    %261 = vmatprep.subr.bf16.mxu0 0
    %262 = vmatpush2.bf16.msra.mxu0 0
    %263 = vmatprep.subr.bf16.mxu0 0
    %264 = vmatpush2.bf16.msra.mxu0 0
    %265 = vmatprep.subr.bf16.mxu0 0
    %266 = vmatpush2.bf16.msra.mxu0 0
    %267 = vmatprep.mubr.bf16.mxu0 0
    %268 = vmatmul.mubr.bf16.gmra.mxu0 %v161
    %v269 = vpop.f32.mrf.mxu0
    %v270 = vadd.f32 %v109, %v269
    %v271 = vpop.f32.mrf.mxu0
    %v272 = vpop.f32.mrf.mxu0
    %v273 = vadd.f32 %v109, %v272
    %v274 = vpop.f32.mrf.mxu0
    %275 = vmatprep.mubr.bf16.mxu0 0
    %276 = vmatmul.mubr.bf16.gmra.mxu0 %v162
    %v277 = vpop.f32.mrf.mxu0
    %v278 = vadd.f32 %v109, %v277
    %v279 = vpop.f32.mrf.mxu0
    %v280 = vpop.f32.mrf.mxu0
    %v281 = vadd.f32 %v109, %v280
    %v282 = vpop.f32.mrf.mxu0
    %283 = vmatprep.mubr.bf16.mxu0 0
    %284 = vmatmul.mubr.bf16.gmra.mxu0 %v163
    %v285 = vpop.f32.mrf.mxu0
    %v286 = vadd.f32 %v109, %v285
    %v287 = vpop.f32.mrf.mxu0
    %v288 = vpop.f32.mrf.mxu0
    %v289 = vadd.f32 %v109, %v288
    %v290 = vpop.f32.mrf.mxu0
    %291 = vmatprep.mubr.bf16.mxu0 0
    %292 = vmatmul.mubr.bf16.gmra.mxu0 %v164
    %v293 = vpop.f32.mrf.mxu0
    %v294 = vadd.f32 %v109, %v293
    %v295 = vpop.f32.mrf.mxu0
    %v296 = vpop.f32.mrf.mxu0
    %v297 = vadd.f32 %v109, %v296
    %v298 = vpop.f32.mrf.mxu0
    %299 = vmatprep.mubr.bf16.mxu0 0
    %300 = vmatmul.mubr.bf16.gmra.mxu0 %v165
    %v301 = vpop.f32.mrf.mxu0
    %v302 = vadd.f32 %v109, %v301
    %v303 = vpop.f32.mrf.mxu0
    %v304 = vpop.f32.mrf.mxu0
    %v305 = vadd.f32 %v109, %v304
    %v306 = vpop.f32.mrf.mxu0
    %307 = vmatprep.mubr.bf16.mxu0 0
    %308 = vmatmul.mubr.bf16.gmra.mxu0 %v166
    %v309 = vpop.f32.mrf.mxu0
    %v310 = vadd.f32 %v109, %v309
    %v311 = vpop.f32.mrf.mxu0
    %v312 = vpop.f32.mrf.mxu0
    %v313 = vadd.f32 %v109, %v312
    %v314 = vpop.f32.mrf.mxu0
    %315 = vmatprep.mubr.bf16.mxu0 0
    %316 = vmatmul.mubr.bf16.gmra.mxu0 %v167
    %v317 = vpop.f32.mrf.mxu0
    %v318 = vadd.f32 %v109, %v317
    %v319 = vpop.f32.mrf.mxu0
    %v320 = vpop.f32.mrf.mxu0
    %v321 = vadd.f32 %v109, %v320
    %v322 = vpop.f32.mrf.mxu0
    %323 = vmatprep.mubr.bf16.mxu0 0
    %324 = vmatmul.mubr.bf16.gmra.mxu0 %v168
    %v325 = vpop.f32.mrf.mxu0
    %v326 = vadd.f32 %v109, %v325
    %v327 = vpop.f32.mrf.mxu0
    %v328 = vpop.f32.mrf.mxu0
    %v329 = vadd.f32 %v109, %v328
    %v330 = vpop.f32.mrf.mxu0
    %331 = vmatprep.mubr.bf16.mxu0 0
    %332 = vmatmul.mubr.bf16.gmra.mxu0 %v169
    %v333 = vpop.f32.mrf.mxu0
    %v334 = vadd.f32 %v109, %v333
    %v335 = vpop.f32.mrf.mxu0
    %v336 = vpop.f32.mrf.mxu0
    %v337 = vadd.f32 %v109, %v336
    %v338 = vpop.f32.mrf.mxu0
    %339 = vmatprep.mubr.bf16.mxu0 0
    %340 = vmatmul.mubr.bf16.gmra.mxu0 %v170
    %v341 = vpop.f32.mrf.mxu0
    %v342 = vadd.f32 %v109, %v341
    %v343 = vpop.f32.mrf.mxu0
    %v344 = vpop.f32.mrf.mxu0
    %v345 = vadd.f32 %v109, %v344
    %v346 = vpop.f32.mrf.mxu0
    %347 = vmatprep.mubr.bf16.mxu0 0
    %348 = vmatmul.mubr.bf16.gmra.mxu0 %v171
    %v349 = vpop.f32.mrf.mxu0
    %v350 = vadd.f32 %v109, %v349
    %v351 = vpop.f32.mrf.mxu0
    %v352 = vpop.f32.mrf.mxu0
    %v353 = vadd.f32 %v109, %v352
    %v354 = vpop.f32.mrf.mxu0
    %355 = vmatprep.mubr.bf16.mxu0 0
    %356 = vmatmul.mubr.bf16.gmra.mxu0 %v172
    %v357 = vpop.f32.mrf.mxu0
    %v358 = vadd.f32 %v109, %v357
    %v359 = vpop.f32.mrf.mxu0
    %v360 = vpop.f32.mrf.mxu0
    %v361 = vadd.f32 %v109, %v360
    %v362 = vpop.f32.mrf.mxu0
    %363 = vmatprep.mubr.bf16.mxu0 0
    %364 = vmatmul.mubr.bf16.gmra.mxu0 %v173
    %v365 = vpop.f32.mrf.mxu0
    %v366 = vadd.f32 %v109, %v365
    %v367 = vpop.f32.mrf.mxu0
    %v368 = vpop.f32.mrf.mxu0
    %v369 = vpop.f32.mrf.mxu0
    %370 = vdwg.mxu0
    %v371 = vxor.u32 %v270, 2147483648
    %v372 = vxor.u32 %v273, 2147483648
    %v373 = vxor.u32 %v278, 2147483648
    %v374 = vxor.u32 %v281, 2147483648
    %v375 = vxor.u32 %v286, 2147483648
    %v376 = vxor.u32 %v289, 2147483648
    %v377 = vxor.u32 %v294, 2147483648
    %v378 = vxor.u32 %v297, 2147483648
    %v379 = vxor.u32 %v302, 2147483648
    %v380 = vxor.u32 %v305, 2147483648
    %v381 = vxor.u32 %v310, 2147483648
    %v382 = vxor.u32 %v313, 2147483648
    %v383 = vxor.u32 %v318, 2147483648
    %v384 = vxor.u32 %v321, 2147483648
    %v385 = vxor.u32 %v326, 2147483648
    %v386 = vxor.u32 %v329, 2147483648
    %v387 = vxor.u32 %v334, 2147483648
    %v388 = vxor.u32 %v337, 2147483648
    %v389 = vxor.u32 %v342, 2147483648
    %v390 = vxor.u32 %v345, 2147483648
    %v391 = vxor.u32 %v350, 2147483648
    %v392 = vxor.u32 %v353, 2147483648
    %v393 = vxor.u32 %v358, 2147483648
    %v394 = vxor.u32 %v361, 2147483648
    %v395 = vxor.u32 %v366, 2147483648
    %v396 = vmul.f32 %v371, 1.442695
    %v397 = vpow.pop %v396
    %v398 = vmul.f32 %v372, 1.442695
    %v399 = vpow.pop %v398
    %v400 = vmul.f32 %v373, 1.442695
    %v401 = vpow.pop %v400
    %v402 = vmul.f32 %v374, 1.442695
    %v403 = vpow.pop %v402
    %v404 = vmul.f32 %v375, 1.442695
    %v405 = vpow.pop %v404
    %v406 = vmul.f32 %v376, 1.442695
    %v407 = vpow.pop %v406
    %v408 = vmul.f32 %v377, 1.442695
    %v409 = vpow.pop %v408
    %v410 = vmul.f32 %v378, 1.442695
    %v411 = vpow.pop %v410
    %v412 = vmul.f32 %v379, 1.442695
    %v413 = vpow.pop %v412
    %v414 = vmul.f32 %v380, 1.442695
    %v415 = vpow.pop %v414
    %v416 = vmul.f32 %v381, 1.442695
    %v417 = vpow.pop %v416
    %v418 = vmul.f32 %v382, 1.442695
    %v419 = vpow.pop %v418
    %v420 = vmul.f32 %v383, 1.442695
    %v421 = vpow.pop %v420
    %v422 = vmul.f32 %v384, 1.442695
    %v423 = vpow.pop %v422
    %v424 = vmul.f32 %v385, 1.442695
    %v425 = vpow.pop %v424
    %v426 = vmul.f32 %v386, 1.442695
    %v427 = vpow.pop %v426
    %v428 = vmul.f32 %v387, 1.442695
    %v429 = vpow.pop %v428
    %v430 = vmul.f32 %v388, 1.442695
    %v431 = vpow.pop %v430
    %v432 = vmul.f32 %v389, 1.442695
    %v433 = vpow.pop %v432
    %v434 = vmul.f32 %v390, 1.442695
    %v435 = vpow.pop %v434
    %v436 = vmul.f32 %v391, 1.442695
    %v437 = vpow.pop %v436
    %v438 = vmul.f32 %v392, 1.442695
    %v439 = vpow.pop %v438
    %v440 = vmul.f32 %v393, 1.442695
    %v441 = vpow.pop %v440
    %v442 = vmul.f32 %v394, 1.442695
    %v443 = vpow.pop %v442
    %v444 = vmul.f32 %v395, 1.442695
    %v445 = vpow.pop %v444
    %v446 = vadd.f32 %v397, 1.0
    %v447 = vadd.f32 %v399, 1.0
    %v448 = vadd.f32 %v401, 1.0
    %v449 = vadd.f32 %v403, 1.0
    %v450 = vadd.f32 %v405, 1.0
    %v451 = vadd.f32 %v407, 1.0
    %v452 = vadd.f32 %v409, 1.0
    %v453 = vadd.f32 %v411, 1.0
    %v454 = vadd.f32 %v413, 1.0
    %v455 = vadd.f32 %v415, 1.0
    %v456 = vadd.f32 %v417, 1.0
    %v457 = vadd.f32 %v419, 1.0
    %v458 = vadd.f32 %v421, 1.0
    %v459 = vadd.f32 %v423, 1.0
    %v460 = vadd.f32 %v425, 1.0
    %v461 = vadd.f32 %v427, 1.0
    %v462 = vadd.f32 %v429, 1.0
    %v463 = vadd.f32 %v431, 1.0
    %v464 = vadd.f32 %v433, 1.0
    %v465 = vadd.f32 %v435, 1.0
    %v466 = vadd.f32 %v437, 1.0
    %v467 = vadd.f32 %v439, 1.0
    %v468 = vadd.f32 %v441, 1.0
    %v469 = vadd.f32 %v443, 1.0
    %v470 = vadd.f32 %v445, 1.0
    %v471 = vrcp.pop %v446
    %v472 = vmul.f32 1.0, %v471
    %v473 = vrcp.pop %v447
    %v474 = vmul.f32 1.0, %v473
    %v475 = vrcp.pop %v448
    %v476 = vmul.f32 1.0, %v475
    %v477 = vrcp.pop %v449
    %v478 = vmul.f32 1.0, %v477
    %v479 = vrcp.pop %v450
    %v480 = vmul.f32 1.0, %v479
    %v481 = vrcp.pop %v451
    %v482 = vmul.f32 1.0, %v481
    %v483 = vrcp.pop %v452
    %v484 = vmul.f32 1.0, %v483
    %v485 = vrcp.pop %v453
    %v486 = vmul.f32 1.0, %v485
    %v487 = vrcp.pop %v454
    %v488 = vmul.f32 1.0, %v487
    %v489 = vrcp.pop %v455
    %v490 = vmul.f32 1.0, %v489
    %v491 = vrcp.pop %v456
    %v492 = vmul.f32 1.0, %v491
    %v493 = vrcp.pop %v457
    %v494 = vmul.f32 1.0, %v493
    %v495 = vrcp.pop %v458
    %v496 = vmul.f32 1.0, %v495
    %v497 = vrcp.pop %v459
    %v498 = vmul.f32 1.0, %v497
    %v499 = vrcp.pop %v460
    %v500 = vmul.f32 1.0, %v499
    %v501 = vrcp.pop %v461
    %v502 = vmul.f32 1.0, %v501
    %v503 = vrcp.pop %v462
    %v504 = vmul.f32 1.0, %v503
    %v505 = vrcp.pop %v463
    %v506 = vmul.f32 1.0, %v505
    %v507 = vrcp.pop %v464
    %v508 = vmul.f32 1.0, %v507
    %v509 = vrcp.pop %v465
    %v510 = vmul.f32 1.0, %v509
    %v511 = vrcp.pop %v466
    %v512 = vmul.f32 1.0, %v511
    %v513 = vrcp.pop %v467
    %v514 = vmul.f32 1.0, %v513
    %v515 = vrcp.pop %v468
    %v516 = vmul.f32 1.0, %v515
    %v517 = vrcp.pop %v469
    %v518 = vmul.f32 1.0, %v517
    %v519 = vrcp.pop %v470
    %v520 = vmul.f32 1.0, %v519
    %v521 = vmul.f32 %v270, %v472
    %v522 = vmul.f32 %v273, %v474
    %v523 = vmul.f32 %v278, %v476
    %v524 = vmul.f32 %v281, %v478
    %v525 = vmul.f32 %v286, %v480
    %v526 = vmul.f32 %v289, %v482
    %v527 = vmul.f32 %v294, %v484
    %v528 = vmul.f32 %v297, %v486
    %v529 = vmul.f32 %v302, %v488
    %v530 = vmul.f32 %v305, %v490
    %v531 = vmul.f32 %v310, %v492
    %v532 = vmul.f32 %v313, %v494
    %v533 = vmul.f32 %v318, %v496
    %v534 = vmul.f32 %v321, %v498
    %v535 = vmul.f32 %v326, %v500
    %v536 = vmul.f32 %v329, %v502
    %v537 = vmul.f32 %v334, %v504
    %v538 = vmul.f32 %v337, %v506
    %v539 = vmul.f32 %v342, %v508
    %v540 = vmul.f32 %v345, %v510
    %v541 = vmul.f32 %v350, %v512
    %v542 = vmul.f32 %v353, %v514
    %v543 = vmul.f32 %v358, %v516
    %v544 = vmul.f32 %v361, %v518
    %v545 = vmul.f32 %v366, %v520
    %v546 = vpack.c.bf16 %v522, %v521
    %v547 = vpack.c.bf16 %v524, %v523
    %v548 = vpack.c.bf16 %v526, %v525
    %v549 = vpack.c.bf16 %v528, %v527
    %v550 = vpack.c.bf16 %v530, %v529
    %v551 = vpack.c.bf16 %v532, %v531
    %v552 = vpack.c.bf16 %v534, %v533
    %v553 = vpack.c.bf16 %v536, %v535
    %v554 = vpack.c.bf16 %v538, %v537
    %v555 = vpack.c.bf16 %v540, %v539
    %v556 = vpack.c.bf16 %v542, %v541
    %v557 = vpack.c.bf16 %v544, %v543
    %v558 = vpack.c.bf16 %v545, %v545
    %v559 = vld [vmem:[#allocation7] sm:$0xf]
    %v560 = vld [vmem:[#allocation7 + $0x4] sm:$0xf]
    %v561 = vld [vmem:[#allocation7 + $0x8] sm:$0xf]
    %v562 = vld [vmem:[#allocation7 + $0xc] sm:$0xf]
    %v563 = vld [vmem:[#allocation7 + $0x10] sm:$0xf]
    %v564 = vld [vmem:[#allocation7 + $0x14] sm:$0xf]
    %v565 = vld [vmem:[#allocation7 + $0x18] sm:$0xf]
    %v566 = vld [vmem:[#allocation7 + $0x1c] sm:$0xf]
    %v567 = vld [vmem:[#allocation7 + $0x20] sm:$0xf]
    %v568 = vld [vmem:[#allocation7 + $0x24] sm:$0xf]
    %v569 = vld [vmem:[#allocation7 + $0x28] sm:$0xf]
    %v570 = vld [vmem:[#allocation7 + $0x2c] sm:$0xf]
    %v571 = vld [vmem:[#allocation7 + $0x30] sm:$0xf]
    %v572 = vld [vmem:[#allocation7 + $0x34] sm:$0xf]
    %v573 = vld [vmem:[#allocation7 + $0x38] sm:$0xf]
    %v574 = vld [vmem:[#allocation7 + $0x3c] sm:$0xf]
    %v575 = vld [vmem:[%s4] sm:$0x1]
    %v577 = vlaneseq
    %v578 = vshrl.u32 %v577, 7
    %v579 = vsub.s32 0, %v578
    %v580 = vrot.slane %v575, %v579
    %v598 = vunpack.c.l.b16 %v559
    %v599 = vunpack.c.l.b16 %v560
    %v600 = vunpack.c.l.b16 %v561
    %v601 = vunpack.c.l.b16 %v562
    %v602 = vunpack.c.l.b16 %v563
    %v603 = vunpack.c.l.b16 %v564
    %v604 = vunpack.c.l.b16 %v565
    %v605 = vunpack.c.l.b16 %v566
    %v606 = vunpack.c.l.b16 %v567
    %v607 = vunpack.c.l.b16 %v568
    %v608 = vunpack.c.l.b16 %v569
    %v609 = vunpack.c.l.b16 %v570
    %v610 = vunpack.c.l.b16 %v571
    %v611 = vunpack.c.l.b16 %v572
    %v612 = vunpack.c.l.b16 %v573
    %v613 = vunpack.c.l.b16 %v574
    %v614 = vpack.c.b16 %v599, %v598
    %v615 = vpack.c.b16 %v601, %v600
    %v616 = vpack.c.b16 %v603, %v602
    %v617 = vpack.c.b16 %v605, %v604
    %v618 = vpack.c.b16 %v607, %v606
    %v619 = vpack.c.b16 %v609, %v608
    %v620 = vpack.c.b16 %v611, %v610
    %v621 = vpack.c.b16 %v613, %v612
    %630 = vmatprep.subr.bf16.mxu0 0
    %631 = vmatpush1.bf16.msra.mxu0 %v621
    %632 = vmatprep.subr.bf16.mxu0 0
    %633 = vmatpush1.bf16.msra.mxu0 %v620
    %634 = vmatprep.subr.bf16.mxu0 0
    %635 = vmatpush1.bf16.msra.mxu0 %v619
    %636 = vmatprep.subr.bf16.mxu0 0
    %637 = vmatpush1.bf16.msra.mxu0 %v618
    %638 = vmatprep.subr.bf16.mxu0 0
    %639 = vmatpush1.bf16.msra.mxu0 %v617
    %640 = vmatprep.subr.bf16.mxu0 0
    %641 = vmatpush1.bf16.msra.mxu0 %v616
    %642 = vmatprep.subr.bf16.mxu0 0
    %643 = vmatpush1.bf16.msra.mxu0 %v615
    %644 = vmatprep.subr.bf16.mxu0 0
    %645 = vmatpush1.bf16.msra.mxu0 %v614
    %646 = vmatprep.subr.bf16.mxu0 0
    %647 = vmatpush2.bf16.msra.mxu0 0
    %648 = vmatprep.subr.bf16.mxu0 0
    %649 = vmatpush2.bf16.msra.mxu0 0
    %650 = vmatprep.subr.bf16.mxu0 0
    %651 = vmatpush2.bf16.msra.mxu0 0
    %652 = vmatprep.subr.bf16.mxu0 0
    %653 = vmatpush2.bf16.msra.mxu0 0
    %654 = vmatprep.subr.bf16.mxu0 0
    %655 = vmatpush2.bf16.msra.mxu0 0
    %656 = vmatprep.subr.bf16.mxu0 0
    %657 = vmatpush2.bf16.msra.mxu0 0
    %658 = vmatprep.subr.bf16.mxu0 0
    %659 = vmatpush2.bf16.msra.mxu0 0
    %660 = vmatprep.subr.bf16.mxu0 0
    %661 = vmatpush2.bf16.msra.mxu0 0
    %662 = vmatprep.mubr.bf16.mxu0 0
    %663 = vmatmul.mubr.bf16.gmra.mxu0 %v546
    %v664 = vpop.f32.mrf.mxu0
    %v665 = vadd.f32 %v580, %v664
    %v666 = vpop.f32.mrf.mxu0
    %v667 = vpop.f32.mrf.mxu0
    %v668 = vadd.f32 %v580, %v667
    %v669 = vpop.f32.mrf.mxu0
    %670 = vmatprep.mubr.bf16.mxu0 0
    %671 = vmatmul.mubr.bf16.gmra.mxu0 %v547
    %v672 = vpop.f32.mrf.mxu0
    %v673 = vadd.f32 %v580, %v672
    %v674 = vpop.f32.mrf.mxu0
    %v675 = vpop.f32.mrf.mxu0
    %v676 = vadd.f32 %v580, %v675
    %v677 = vpop.f32.mrf.mxu0
    %678 = vmatprep.mubr.bf16.mxu0 0
    %679 = vmatmul.mubr.bf16.gmra.mxu0 %v548
    %v680 = vpop.f32.mrf.mxu0
    %v681 = vadd.f32 %v580, %v680
    %v682 = vpop.f32.mrf.mxu0
    %v683 = vpop.f32.mrf.mxu0
    %v684 = vadd.f32 %v580, %v683
    %v685 = vpop.f32.mrf.mxu0
    %686 = vmatprep.mubr.bf16.mxu0 0
    %687 = vmatmul.mubr.bf16.gmra.mxu0 %v549
    %v688 = vpop.f32.mrf.mxu0
    %v689 = vadd.f32 %v580, %v688
    %v690 = vpop.f32.mrf.mxu0
    %v691 = vpop.f32.mrf.mxu0
    %v692 = vadd.f32 %v580, %v691
    %v693 = vpop.f32.mrf.mxu0
    %694 = vmatprep.mubr.bf16.mxu0 0
    %695 = vmatmul.mubr.bf16.gmra.mxu0 %v550
    %v696 = vpop.f32.mrf.mxu0
    %v697 = vadd.f32 %v580, %v696
    %v698 = vpop.f32.mrf.mxu0
    %v699 = vpop.f32.mrf.mxu0
    %v700 = vadd.f32 %v580, %v699
    %v701 = vpop.f32.mrf.mxu0
    %702 = vmatprep.mubr.bf16.mxu0 0
    %703 = vmatmul.mubr.bf16.gmra.mxu0 %v551
    %v704 = vpop.f32.mrf.mxu0
    %v705 = vadd.f32 %v580, %v704
    %v706 = vpop.f32.mrf.mxu0
    %v707 = vpop.f32.mrf.mxu0
    %v708 = vadd.f32 %v580, %v707
    %v709 = vpop.f32.mrf.mxu0
    %710 = vmatprep.mubr.bf16.mxu0 0
    %711 = vmatmul.mubr.bf16.gmra.mxu0 %v552
    %v712 = vpop.f32.mrf.mxu0
    %v713 = vadd.f32 %v580, %v712
    %v714 = vpop.f32.mrf.mxu0
    %v715 = vpop.f32.mrf.mxu0
    %v716 = vadd.f32 %v580, %v715
    %v717 = vpop.f32.mrf.mxu0
    %718 = vmatprep.mubr.bf16.mxu0 0
    %719 = vmatmul.mubr.bf16.gmra.mxu0 %v553
    %v720 = vpop.f32.mrf.mxu0
    %v721 = vadd.f32 %v580, %v720
    %v722 = vpop.f32.mrf.mxu0
    %v723 = vpop.f32.mrf.mxu0
    %v724 = vadd.f32 %v580, %v723
    %v725 = vpop.f32.mrf.mxu0
    %726 = vmatprep.mubr.bf16.mxu0 0
    %727 = vmatmul.mubr.bf16.gmra.mxu0 %v554
    %v728 = vpop.f32.mrf.mxu0
    %v729 = vadd.f32 %v580, %v728
    %v730 = vpop.f32.mrf.mxu0
    %v731 = vpop.f32.mrf.mxu0
    %v732 = vadd.f32 %v580, %v731
    %v733 = vpop.f32.mrf.mxu0
    %734 = vmatprep.mubr.bf16.mxu0 0
    %735 = vmatmul.mubr.bf16.gmra.mxu0 %v555
    %v736 = vpop.f32.mrf.mxu0
    %v737 = vadd.f32 %v580, %v736
    %v738 = vpop.f32.mrf.mxu0
    %v739 = vpop.f32.mrf.mxu0
    %v740 = vadd.f32 %v580, %v739
    %v741 = vpop.f32.mrf.mxu0
    %742 = vmatprep.mubr.bf16.mxu0 0
    %743 = vmatmul.mubr.bf16.gmra.mxu0 %v556
    %v744 = vpop.f32.mrf.mxu0
    %v745 = vadd.f32 %v580, %v744
    %v746 = vpop.f32.mrf.mxu0
    %v747 = vpop.f32.mrf.mxu0
    %v748 = vadd.f32 %v580, %v747
    %v749 = vpop.f32.mrf.mxu0
    %750 = vmatprep.mubr.bf16.mxu0 0
    %751 = vmatmul.mubr.bf16.gmra.mxu0 %v557
    %v752 = vpop.f32.mrf.mxu0
    %v753 = vadd.f32 %v580, %v752
    %v754 = vpop.f32.mrf.mxu0
    %v755 = vpop.f32.mrf.mxu0
    %v756 = vadd.f32 %v580, %v755
    %v757 = vpop.f32.mrf.mxu0
    %758 = vmatprep.mubr.bf16.mxu0 0
    %759 = vmatmul.mubr.bf16.gmra.mxu0 %v558
    %v760 = vpop.f32.mrf.mxu0
    %v761 = vadd.f32 %v580, %v760
    %v762 = vpop.f32.mrf.mxu0
    %v763 = vpop.f32.mrf.mxu0
    %v764 = vpop.f32.mrf.mxu0
    %765 = vdwg.mxu0
    %v766 = vpack.c.bf16 %v668, %v665
    %v767 = vpack.c.bf16 %v676, %v673
    %v768 = vpack.c.bf16 %v684, %v681
    %v769 = vpack.c.bf16 %v692, %v689
    %v770 = vpack.c.bf16 %v700, %v697
    %v771 = vpack.c.bf16 %v708, %v705
    %v772 = vpack.c.bf16 %v716, %v713
    %v773 = vpack.c.bf16 %v724, %v721
    %v774 = vpack.c.bf16 %v732, %v729
    %v775 = vpack.c.bf16 %v740, %v737
    %v776 = vpack.c.bf16 %v748, %v745
    %v777 = vpack.c.bf16 %v756, %v753
    %v778 = vpack.c.bf16 %v761, %v761
    %v792 = vunpack.c.l.b16 %v766
    %v793 = vunpack.c.h.b16 %v766
    %v794 = vunpack.c.l.b16 %v767
    %v795 = vunpack.c.h.b16 %v767
    %v796 = vunpack.c.l.b16 %v768
    %v797 = vunpack.c.h.b16 %v768
    %v798 = vunpack.c.l.b16 %v769
    %v799 = vunpack.c.h.b16 %v769
    %v800 = vunpack.c.l.b16 %v770
    %v801 = vunpack.c.h.b16 %v770
    %v802 = vunpack.c.l.b16 %v771
    %v803 = vunpack.c.h.b16 %v771
    %v804 = vunpack.c.l.b16 %v772
    %v805 = vunpack.c.h.b16 %v772
    %v806 = vunpack.c.l.b16 %v773
    %v807 = vunpack.c.h.b16 %v773
    %v808 = vunpack.c.l.b16 %v774
    %v809 = vunpack.c.h.b16 %v774
    %v810 = vunpack.c.l.b16 %v775
    %v811 = vunpack.c.h.b16 %v775
    %v812 = vunpack.c.l.b16 %v776
    %v813 = vunpack.c.h.b16 %v776
    %v814 = vunpack.c.l.b16 %v777
    %v815 = vunpack.c.h.b16 %v777
    %v816 = vunpack.c.l.b16 %v778
    %v817 = vpack.c.b16 %v792, %v792
    %v818 = vpack.c.b16 %v793, %v793
    %v819 = vpack.c.b16 %v794, %v794
    %v820 = vpack.c.b16 %v795, %v795
    %v821 = vpack.c.b16 %v796, %v796
    %v822 = vpack.c.b16 %v797, %v797
    %v823 = vpack.c.b16 %v798, %v798
    %v824 = vpack.c.b16 %v799, %v799
    %v825 = vpack.c.b16 %v800, %v800
    %v826 = vpack.c.b16 %v801, %v801
    %v827 = vpack.c.b16 %v802, %v802
    %v828 = vpack.c.b16 %v803, %v803
    %v829 = vpack.c.b16 %v804, %v804
    %v830 = vpack.c.b16 %v805, %v805
    %v831 = vpack.c.b16 %v806, %v806
    %v832 = vpack.c.b16 %v807, %v807
    %v833 = vpack.c.b16 %v808, %v808
    %v834 = vpack.c.b16 %v809, %v809
    %v835 = vpack.c.b16 %v810, %v810
    %v836 = vpack.c.b16 %v811, %v811
    %v837 = vpack.c.b16 %v812, %v812
    %v838 = vpack.c.b16 %v813, %v813
    %v839 = vpack.c.b16 %v814, %v814
    %v840 = vpack.c.b16 %v815, %v815
    %v841 = vpack.c.b16 %v816, %v816
    %867 = vst [vmem:[#allocation8] sm:$0xf] %v817
    %868 = vst [vmem:[#allocation8 + $0x4] sm:$0xf] %v818
    %869 = vst [vmem:[#allocation8 + $0x8] sm:$0xf] %v819
    %870 = vst [vmem:[#allocation8 + $0xc] sm:$0xf] %v820
    %871 = vst [vmem:[#allocation8 + $0x10] sm:$0xf] %v821
    %872 = vst [vmem:[#allocation8 + $0x14] sm:$0xf] %v822
    %873 = vst [vmem:[#allocation8 + $0x18] sm:$0xf] %v823
    %874 = vst [vmem:[#allocation8 + $0x1c] sm:$0xf] %v824
    %875 = vst [vmem:[#allocation8 + $0x20] sm:$0xf] %v825
    %876 = vst [vmem:[#allocation8 + $0x24] sm:$0xf] %v826
    %877 = vst [vmem:[#allocation8 + $0x28] sm:$0xf] %v827
    %878 = vst [vmem:[#allocation8 + $0x2c] sm:$0xf] %v828
    %879 = vst [vmem:[#allocation8 + $0x30] sm:$0xf] %v829
    %880 = vst [vmem:[#allocation8 + $0x34] sm:$0xf] %v830
    %881 = vst [vmem:[#allocation8 + $0x38] sm:$0xf] %v831
    %882 = vst [vmem:[#allocation8 + $0x3c] sm:$0xf] %v832
    %883 = vst [vmem:[#allocation8 + $0x40] sm:$0xf] %v833
    %884 = vst [vmem:[#allocation8 + $0x44] sm:$0xf] %v834
    %885 = vst [vmem:[#allocation8 + $0x48] sm:$0xf] %v835
    %886 = vst [vmem:[#allocation8 + $0x4c] sm:$0xf] %v836
    %887 = vst [vmem:[#allocation8 + $0x50] sm:$0xf] %v837
    %888 = vst [vmem:[#allocation8 + $0x54] sm:$0xf] %v838
    %889 = vst [vmem:[#allocation8 + $0x58] sm:$0xf] %v839
    %890 = vst [vmem:[#allocation8 + $0x5c] sm:$0xf] %v840
    %891 = vst [vmem:[#allocation8 + $0x60] sm:$0xf] %v841
    // Predicated region
    $region34: #{tpu_custom_call.1} parent=1 // pred_check
      _
    $region35: #{tpu_custom_call.1} parent=1 // pred_check_branch
      %893 = sbr.rel (0) target = $region37
    $region36: #{tpu_custom_call.1} parent=1 // pred_region
      %s895 = ssub.s32 1600, 1600
      %896 = vsyncadd [#allocation4], %s895
      %s897 = sshll.u32 [#allocation8], 4
      %s898 = int_to_ptr.vmem [resolvable:$true] %s897
      %903 = dma.vmem_to_hbm [thread:$0]  %s898, 1600, %s5, [#allocation4], 64, 64, 4
    $region37: #{tpu_custom_call.1} parent=1 // pred_fallthru
      _
    // Predicated region
    $region38: #{tpu_custom_call.1} parent=1 // pred_check
      _
    $region39: #{tpu_custom_call.1} parent=1 // pred_check_branch
      %905 = sbr.rel (0) target = $region41
    $region40: #{tpu_custom_call.1} parent=1 // pred_region
      %906 = dma.done [#allocation4], 1600
    $region41: #{tpu_custom_call.1} parent=1 // pred_fallthru
      _
    %907 = vsyncpa [#allocation3], 1
    %908 = vsyncpa [#allocation6], 1
    %909 = vsyncpa [#allocation4], 1

// kernel: tpu_custom_call.1
$region0: #{tpu_custom_call.1}
  #allocation0 [shape = 'u32[]', space=smem, size = 0x4, offset = 0x4, fixed_abs, tag = 'smem constant byte address 0x4 - core index']
  #allocation1 [shape = 'u32[144,128]{1,0:T(1,128)}', space=vmem, size = 0x12000, scoped, tag = 'internal scratch']
  %s0 = inlined_call_operand.hbm [shape: bf16[200,128], index: 0, kind: input, shape index: {}]
  %s1 = inlined_call_operand.hbm [shape: bf16[128,128], index: 1, kind: input, shape index: {}]
  %s2 = inlined_call_operand.vmem [shape: f32[1,128], index: 2, kind: input, shape index: {}]
  %s3 = inlined_call_operand.hbm [shape: bf16[128,128], index: 3, kind: input, shape index: {}]
  %s4 = inlined_call_operand.vmem [shape: f32[1,128], index: 4, kind: input, shape index: {}]
  %s5 = inlined_call_operand.hbm [shape: bf16[200,128], index: 5, kind: output, shape index: {}]
  %s6 = sld [smem:[#allocation0]]
  $region42: #{tpu_custom_call.1} parent=0
    _
  %s8 = ssub.s32 1, %s6
  %s9 = scalar_select 0, %s8, %s6
  $region1: #{tpu_custom_call.1} parent=0
    #allocation2 [shape = 'u8[51200]{0}', space=vmem, size = 0xc800, scoped, tag = 'input window, operand 0, single buffered']
    #allocation3 [shape = 's32[1]{0}', space=sflag, size = 0x4, scoped, tag = 'scoped memory for tpu_custom_call.1']
    #allocation4 [shape = 's32[1]{0}', space=sflag, size = 0x4, scoped, tag = 'scoped memory for tpu_custom_call.1']
    #allocation5 [shape = 'u8[32768]{0}', space=vmem, size = 0x8000, scoped, tag = 'input window, operand 1, single buffered']
    #allocation6 [shape = 's32[1]{0}', space=sflag, size = 0x4, scoped, tag = 'scoped memory for tpu_custom_call.1']
    #allocation7 [shape = 'u8[32768]{0}', space=vmem, size = 0x8000, scoped, tag = 'input window, operand 3, single buffered']
    #allocation8 [shape = 'u8[51200]{0}', space=vmem, size = 0xc800, scoped, tag = 'output window, operand 0, single buffered']
    %10 = vsyncpa [#allocation3], 0
    %11 = vsyncpa [#allocation6], 0
    %12 = vsyncpa [#allocation4], 0
    // Predicated region
    $region2: #{tpu_custom_call.1} parent=1 // pred_check
      _
    $region3: #{tpu_custom_call.1} parent=1 // pred_check_branch
      %14 = sbr.rel (0) target = $region5
    $region4: #{tpu_custom_call.1} parent=1 // pred_region
      %s16 = ssub.s32 1600, 1600
      %17 = vsyncadd [#allocation3], %s16
      %s18 = sshll.u32 [#allocation2], 4
      %s19 = int_to_ptr.vmem [resolvable:$true] %s18
      %24 = dma.hbm_to_vmem [thread:$0]  %s0, 1600, %s19, [#allocation3], 64, 64, 4
    $region5: #{tpu_custom_call.1} parent=1 // pred_fallthru
      _
    // Predicated region
    $region6: #{tpu_custom_call.1} parent=1 // pred_check
      _
    $region7: #{tpu_custom_call.1} parent=1 // pred_check_branch
      %26 = sbr.rel (0) target = $region9
    $region8: #{tpu_custom_call.1} parent=1 // pred_region
      %s28 = ssub.s32 1024, 1024
      %29 = vsyncadd [#allocation6], %s28
      %s30 = sshll.u32 [#allocation5], 4
      %s31 = int_to_ptr.vmem [resolvable:$true] %s30
      %36 = dma.hbm_to_vmem [thread:$0]  %s1, 1024, %s31, [#allocation6], 64, 64, 4
    $region9: #{tpu_custom_call.1} parent=1 // pred_fallthru
      _
    // Predicated region
    $region10: #{tpu_custom_call.1} parent=1 // pred_check
      _
    $region11: #{tpu_custom_call.1} parent=1 // pred_check_branch
      %38 = sbr.rel (0) target = $region13
    $region12: #{tpu_custom_call.1} parent=1 // pred_region
      _
    $region13: #{tpu_custom_call.1} parent=1 // pred_fallthru
      _
    // Predicated region
    $region14: #{tpu_custom_call.1} parent=1 // pred_check
      _
    $region15: #{tpu_custom_call.1} parent=1 // pred_check_branch
      %40 = sbr.rel (0) target = $region17
    $region16: #{tpu_custom_call.1} parent=1 // pred_region
      %s42 = ssub.s32 1024, 1024
      %43 = vsyncadd [#allocation6], %s42
      %s44 = sshll.u32 [#allocation7], 4
      %s45 = int_to_ptr.vmem [resolvable:$true] %s44
      %50 = dma.hbm_to_vmem [thread:$0]  %s3, 1024, %s45, [#allocation6], 64, 64, 4
    $region17: #{tpu_custom_call.1} parent=1 // pred_fallthru
      _
    // Predicated region
    $region18: #{tpu_custom_call.1} parent=1 // pred_check
      _
    $region19: #{tpu_custom_call.1} parent=1 // pred_check_branch
      %52 = sbr.rel (0) target = $region21
    $region20: #{tpu_custom_call.1} parent=1 // pred_region
      _
    $region21: #{tpu_custom_call.1} parent=1 // pred_fallthru
      _
    // Predicated region
    $region22: #{tpu_custom_call.1} parent=1 // pred_check
      _
    $region23: #{tpu_custom_call.1} parent=1 // pred_check_branch
      %54 = sbr.rel (0) target = $region25
    $region24: #{tpu_custom_call.1} parent=1 // pred_region
      %55 = dma.done [#allocation3], 1600
    $region25: #{tpu_custom_call.1} parent=1 // pred_fallthru
      _
    // Predicated region
    $region26: #{tpu_custom_call.1} parent=1 // pred_check
      _
    $region27: #{tpu_custom_call.1} parent=1 // pred_check_branch
      %57 = sbr.rel (0) target = $region29
    $region28: #{tpu_custom_call.1} parent=1 // pred_region
      %58 = dma.done [#allocation6], 1024
    $region29: #{tpu_custom_call.1} parent=1 // pred_fallthru
      _
    // Predicated region
    $region30: #{tpu_custom_call.1} parent=1 // pred_check
      _
    $region31: #{tpu_custom_call.1} parent=1 // pred_check_branch
      %60 = sbr.rel (0) target = $region33
    $region32: #{tpu_custom_call.1} parent=1 // pred_region
      %61 = dma.done [#allocation6], 1024
    $region33: #{tpu_custom_call.1} parent=1 // pred_fallthru
      _
    %v63 = vld [vmem:[#allocation2] sm:$0xf]
    %v64 = vld [vmem:[#allocation2 + $0x4] sm:$0xf]
    %v65 = vld [vmem:[#allocation2 + $0x8] sm:$0xf]
    %v66 = vld [vmem:[#allocation2 + $0xc] sm:$0xf]
    %v67 = vld [vmem:[#allocation2 + $0x10] sm:$0xf]
    %v68 = vld [vmem:[#allocation2 + $0x14] sm:$0xf]
    %v69 = vld [vmem:[#allocation2 + $0x18] sm:$0xf]
    %v70 = vld [vmem:[#allocation2 + $0x1c] sm:$0xf]
    %v71 = vld [vmem:[#allocation2 + $0x20] sm:$0xf]
    %v72 = vld [vmem:[#allocation2 + $0x24] sm:$0xf]
    %v73 = vld [vmem:[#allocation2 + $0x28] sm:$0xf]
    %v74 = vld [vmem:[#allocation2 + $0x2c] sm:$0xf]
    %v75 = vld [vmem:[#allocation2 + $0x30] sm:$0xf]
    %v76 = vld [vmem:[#allocation2 + $0x34] sm:$0xf]
    %v77 = vld [vmem:[#allocation2 + $0x38] sm:$0xf]
    %v78 = vld [vmem:[#allocation2 + $0x3c] sm:$0xf]
    %v79 = vld [vmem:[#allocation2 + $0x40] sm:$0xf]
    %v80 = vld [vmem:[#allocation2 + $0x44] sm:$0xf]
    %v81 = vld [vmem:[#allocation2 + $0x48] sm:$0xf]
    %v82 = vld [vmem:[#allocation2 + $0x4c] sm:$0xf]
    %v83 = vld [vmem:[#allocation2 + $0x50] sm:$0xf]
    %v84 = vld [vmem:[#allocation2 + $0x54] sm:$0xf]
    %v85 = vld [vmem:[#allocation2 + $0x58] sm:$0xf]
    %v86 = vld [vmem:[#allocation2 + $0x5c] sm:$0xf]
    %v87 = vld [vmem:[#allocation2 + $0x60] sm:$0xf]
    %v88 = vld [vmem:[#allocation5] sm:$0xf]
    %v89 = vld [vmem:[#allocation5 + $0x4] sm:$0xf]
    %v90 = vld [vmem:[#allocation5 + $0x8] sm:$0xf]
    %v91 = vld [vmem:[#allocation5 + $0xc] sm:$0xf]
    %v92 = vld [vmem:[#allocation5 + $0x10] sm:$0xf]
    %v93 = vld [vmem:[#allocation5 + $0x14] sm:$0xf]
    %v94 = vld [vmem:[#allocation5 + $0x18] sm:$0xf]
    %v95 = vld [vmem:[#allocation5 + $0x1c] sm:$0xf]
    %v96 = vld [vmem:[#allocation5 + $0x20] sm:$0xf]
    %v97 = vld [vmem:[#allocation5 + $0x24] sm:$0xf]
    %v98 = vld [vmem:[#allocation5 + $0x28] sm:$0xf]
    %v99 = vld [vmem:[#allocation5 + $0x2c] sm:$0xf]
    %v100 = vld [vmem:[#allocation5 + $0x30] sm:$0xf]
    %v101 = vld [vmem:[#allocation5 + $0x34] sm:$0xf]
    %v102 = vld [vmem:[#allocation5 + $0x38] sm:$0xf]
    %v103 = vld [vmem:[#allocation5 + $0x3c] sm:$0xf]
    %v104 = vld [vmem:[%s2] sm:$0x1]
    %v106 = vlaneseq
    %v107 = vshrl.u32 %v106, 7
    %v108 = vsub.s32 0, %v107
    %v109 = vrot.slane %v104, %v108
    %v136 = vunpack.c.l.b16 %v63
    %v137 = vunpack.c.l.b16 %v64
    %v138 = vunpack.c.l.b16 %v65
    %v139 = vunpack.c.l.b16 %v66
    %v140 = vunpack.c.l.b16 %v67
    %v141 = vunpack.c.l.b16 %v68
    %v142 = vunpack.c.l.b16 %v69
    %v143 = vunpack.c.l.b16 %v70
    %v144 = vunpack.c.l.b16 %v71
    %v145 = vunpack.c.l.b16 %v72
    %v146 = vunpack.c.l.b16 %v73
    %v147 = vunpack.c.l.b16 %v74
    %v148 = vunpack.c.l.b16 %v75
    %v149 = vunpack.c.l.b16 %v76
    %v150 = vunpack.c.l.b16 %v77
    %v151 = vunpack.c.l.b16 %v78
    %v152 = vunpack.c.l.b16 %v79
    %v153 = vunpack.c.l.b16 %v80
    %v154 = vunpack.c.l.b16 %v81
    %v155 = vunpack.c.l.b16 %v82
    %v156 = vunpack.c.l.b16 %v83
    %v157 = vunpack.c.l.b16 %v84
    %v158 = vunpack.c.l.b16 %v85
    %v159 = vunpack.c.l.b16 %v86
    %v160 = vunpack.c.l.b16 %v87
    %v161 = vpack.c.b16 %v137, %v136
    %v162 = vpack.c.b16 %v139, %v138
    %v163 = vpack.c.b16 %v141, %v140
    %v164 = vpack.c.b16 %v143, %v142
    %v165 = vpack.c.b16 %v145, %v144
    %v166 = vpack.c.b16 %v147, %v146
    %v167 = vpack.c.b16 %v149, %v148
    %v168 = vpack.c.b16 %v151, %v150
    %v169 = vpack.c.b16 %v153, %v152
    %v170 = vpack.c.b16 %v155, %v154
    %v171 = vpack.c.b16 %v157, %v156
    %v172 = vpack.c.b16 %v159, %v158
    %v173 = vpack.c.b16 %v160, %v160
    %v203 = vunpack.c.l.b16 %v88
    %v204 = vunpack.c.l.b16 %v89
    %v205 = vunpack.c.l.b16 %v90
    %v206 = vunpack.c.l.b16 %v91
    %v207 = vunpack.c.l.b16 %v92
    %v208 = vunpack.c.l.b16 %v93
    %v209 = vunpack.c.l.b16 %v94
    %v210 = vunpack.c.l.b16 %v95
    %v211 = vunpack.c.l.b16 %v96
    %v212 = vunpack.c.l.b16 %v97
    %v213 = vunpack.c.l.b16 %v98
    %v214 = vunpack.c.l.b16 %v99
    %v215 = vunpack.c.l.b16 %v100
    %v216 = vunpack.c.l.b16 %v101
    %v217 = vunpack.c.l.b16 %v102
    %v218 = vunpack.c.l.b16 %v103
    %v219 = vpack.c.b16 %v204, %v203
    %v220 = vpack.c.b16 %v206, %v205
    %v221 = vpack.c.b16 %v208, %v207
    %v222 = vpack.c.b16 %v210, %v209
    %v223 = vpack.c.b16 %v212, %v211
    %v224 = vpack.c.b16 %v214, %v213
    %v225 = vpack.c.b16 %v216, %v215
    %v226 = vpack.c.b16 %v218, %v217
    %235 = vmatprep.subr.bf16.mxu0 0
    %236 = vmatpush1.bf16.msra.mxu0 %v226
    %237 = vmatprep.subr.bf16.mxu0 0
    %238 = vmatpush1.bf16.msra.mxu0 %v225
    %239 = vmatprep.subr.bf16.mxu0 0
    %240 = vmatpush1.bf16.msra.mxu0 %v224
    %241 = vmatprep.subr.bf16.mxu0 0
    %242 = vmatpush1.bf16.msra.mxu0 %v223
    %243 = vmatprep.subr.bf16.mxu0 0
    %244 = vmatpush1.bf16.msra.mxu0 %v222
    %245 = vmatprep.subr.bf16.mxu0 0
    %246 = vmatpush1.bf16.msra.mxu0 %v221
    %247 = vmatprep.subr.bf16.mxu0 0
    %248 = vmatpush1.bf16.msra.mxu0 %v220
    %249 = vmatprep.subr.bf16.mxu0 0
    %250 = vmatpush1.bf16.msra.mxu0 %v219
    %251 = vmatprep.subr.bf16.mxu0 0
    %252 = vmatpush2.bf16.msra.mxu0 0
    %253 = vmatprep.subr.bf16.mxu0 0
    %254 = vmatpush2.bf16.msra.mxu0 0
    %255 = vmatprep.subr.bf16.mxu0 0
    %256 = vmatpush2.bf16.msra.mxu0 0
    %257 = vmatprep.subr.bf16.mxu0 0
    %258 = vmatpush2.bf16.msra.mxu0 0
    %259 = vmatprep.subr.bf16.mxu0 0
    %260 = vmatpush2.bf16.msra.mxu0 0
    %261 = vmatprep.subr.bf16.mxu0 0
    %262 = vmatpush2.bf16.msra.mxu0 0
    %263 = vmatprep.subr.bf16.mxu0 0
    %264 = vmatpush2.bf16.msra.mxu0 0
    %265 = vmatprep.subr.bf16.mxu0 0
    %266 = vmatpush2.bf16.msra.mxu0 0
    %267 = vmatprep.mubr.bf16.mxu0 0
    %268 = vmatmul.mubr.bf16.gmra.mxu0 %v161
    %v269 = vpop.f32.mrf.mxu0
    %v270 = vadd.f32 %v109, %v269
    %v271 = vpop.f32.mrf.mxu0
    %v272 = vpop.f32.mrf.mxu0
    %v273 = vadd.f32 %v109, %v272
    %v274 = vpop.f32.mrf.mxu0
    %275 = vmatprep.mubr.bf16.mxu0 0
    %276 = vmatmul.mubr.bf16.gmra.mxu0 %v162
    %v277 = vpop.f32.mrf.mxu0
    %v278 = vadd.f32 %v109, %v277
    %v279 = vpop.f32.mrf.mxu0
    %v280 = vpop.f32.mrf.mxu0
    %v281 = vadd.f32 %v109, %v280
    %v282 = vpop.f32.mrf.mxu0
    %283 = vmatprep.mubr.bf16.mxu0 0
    %284 = vmatmul.mubr.bf16.gmra.mxu0 %v163
    %v285 = vpop.f32.mrf.mxu0
    %v286 = vadd.f32 %v109, %v285
    %v287 = vpop.f32.mrf.mxu0
    %v288 = vpop.f32.mrf.mxu0
    %v289 = vadd.f32 %v109, %v288
    %v290 = vpop.f32.mrf.mxu0
    %291 = vmatprep.mubr.bf16.mxu0 0
    %292 = vmatmul.mubr.bf16.gmra.mxu0 %v164
    %v293 = vpop.f32.mrf.mxu0
    %v294 = vadd.f32 %v109, %v293
    %v295 = vpop.f32.mrf.mxu0
    %v296 = vpop.f32.mrf.mxu0
    %v297 = vadd.f32 %v109, %v296
    %v298 = vpop.f32.mrf.mxu0
    %299 = vmatprep.mubr.bf16.mxu0 0
    %300 = vmatmul.mubr.bf16.gmra.mxu0 %v165
    %v301 = vpop.f32.mrf.mxu0
    %v302 = vadd.f32 %v109, %v301
    %v303 = vpop.f32.mrf.mxu0
    %v304 = vpop.f32.mrf.mxu0
    %v305 = vadd.f32 %v109, %v304
    %v306 = vpop.f32.mrf.mxu0
    %307 = vmatprep.mubr.bf16.mxu0 0
    %308 = vmatmul.mubr.bf16.gmra.mxu0 %v166
    %v309 = vpop.f32.mrf.mxu0
    %v310 = vadd.f32 %v109, %v309
    %v311 = vpop.f32.mrf.mxu0
    %v312 = vpop.f32.mrf.mxu0
    %v313 = vadd.f32 %v109, %v312
    %v314 = vpop.f32.mrf.mxu0
    %315 = vmatprep.mubr.bf16.mxu0 0
    %316 = vmatmul.mubr.bf16.gmra.mxu0 %v167
    %v317 = vpop.f32.mrf.mxu0
    %v318 = vadd.f32 %v109, %v317
    %v319 = vpop.f32.mrf.mxu0
    %v320 = vpop.f32.mrf.mxu0
    %v321 = vadd.f32 %v109, %v320
    %v322 = vpop.f32.mrf.mxu0
    %323 = vmatprep.mubr.bf16.mxu0 0
    %324 = vmatmul.mubr.bf16.gmra.mxu0 %v168
    %v325 = vpop.f32.mrf.mxu0
    %v326 = vadd.f32 %v109, %v325
    %v327 = vpop.f32.mrf.mxu0
    %v328 = vpop.f32.mrf.mxu0
    %v329 = vadd.f32 %v109, %v328
    %v330 = vpop.f32.mrf.mxu0
    %331 = vmatprep.mubr.bf16.mxu0 0
    %332 = vmatmul.mubr.bf16.gmra.mxu0 %v169
    %v333 = vpop.f32.mrf.mxu0
    %v334 = vadd.f32 %v109, %v333
    %v335 = vpop.f32.mrf.mxu0
    %v336 = vpop.f32.mrf.mxu0
    %v337 = vadd.f32 %v109, %v336
    %v338 = vpop.f32.mrf.mxu0
    %339 = vmatprep.mubr.bf16.mxu0 0
    %340 = vmatmul.mubr.bf16.gmra.mxu0 %v170
    %v341 = vpop.f32.mrf.mxu0
    %v342 = vadd.f32 %v109, %v341
    %v343 = vpop.f32.mrf.mxu0
    %v344 = vpop.f32.mrf.mxu0
    %v345 = vadd.f32 %v109, %v344
    %v346 = vpop.f32.mrf.mxu0
    %347 = vmatprep.mubr.bf16.mxu0 0
    %348 = vmatmul.mubr.bf16.gmra.mxu0 %v171
    %v349 = vpop.f32.mrf.mxu0
    %v350 = vadd.f32 %v109, %v349
    %v351 = vpop.f32.mrf.mxu0
    %v352 = vpop.f32.mrf.mxu0
    %v353 = vadd.f32 %v109, %v352
    %v354 = vpop.f32.mrf.mxu0
    %355 = vmatprep.mubr.bf16.mxu0 0
    %356 = vmatmul.mubr.bf16.gmra.mxu0 %v172
    %v357 = vpop.f32.mrf.mxu0
    %v358 = vadd.f32 %v109, %v357
    %v359 = vpop.f32.mrf.mxu0
    %v360 = vpop.f32.mrf.mxu0
    %v361 = vadd.f32 %v109, %v360
    %v362 = vpop.f32.mrf.mxu0
    %363 = vmatprep.mubr.bf16.mxu0 0
    %364 = vmatmul.mubr.bf16.gmra.mxu0 %v173
    %v365 = vpop.f32.mrf.mxu0
    %v366 = vadd.f32 %v109, %v365
    %v367 = vpop.f32.mrf.mxu0
    %v368 = vpop.f32.mrf.mxu0
    %v369 = vpop.f32.mrf.mxu0
    %370 = vdwg.mxu0
    %v371 = vxor.u32 %v270, 2147483648
    %v372 = vxor.u32 %v273, 2147483648
    %v373 = vxor.u32 %v278, 2147483648
    %v374 = vxor.u32 %v281, 2147483648
    %v375 = vxor.u32 %v286, 2147483648
    %v376 = vxor.u32 %v289, 2147483648
    %v377 = vxor.u32 %v294, 2147483648
    %v378 = vxor.u32 %v297, 2147483648
    %v379 = vxor.u32 %v302, 2147483648
    %v380 = vxor.u32 %v305, 2147483648
    %v381 = vxor.u32 %v310, 2147483648
    %v382 = vxor.u32 %v313, 2147483648
    %v383 = vxor.u32 %v318, 2147483648
    %v384 = vxor.u32 %v321, 2147483648
    %v385 = vxor.u32 %v326, 2147483648
    %v386 = vxor.u32 %v329, 2147483648
    %v387 = vxor.u32 %v334, 2147483648
    %v388 = vxor.u32 %v337, 2147483648
    %v389 = vxor.u32 %v342, 2147483648
    %v390 = vxor.u32 %v345, 2147483648
    %v391 = vxor.u32 %v350, 2147483648
    %v392 = vxor.u32 %v353, 2147483648
    %v393 = vxor.u32 %v358, 2147483648
    %v394 = vxor.u32 %v361, 2147483648
    %v395 = vxor.u32 %v366, 2147483648
    %v396 = vmul.f32 %v371, 1.442695
    %v397 = vpow.pop %v396
    %v398 = vmul.f32 %v372, 1.442695
    %v399 = vpow.pop %v398
    %v400 = vmul.f32 %v373, 1.442695
    %v401 = vpow.pop %v400
    %v402 = vmul.f32 %v374, 1.442695
    %v403 = vpow.pop %v402
    %v404 = vmul.f32 %v375, 1.442695
    %v405 = vpow.pop %v404
    %v406 = vmul.f32 %v376, 1.442695
    %v407 = vpow.pop %v406
    %v408 = vmul.f32 %v377, 1.442695
    %v409 = vpow.pop %v408
    %v410 = vmul.f32 %v378, 1.442695
    %v411 = vpow.pop %v410
    %v412 = vmul.f32 %v379, 1.442695
    %v413 = vpow.pop %v412
    %v414 = vmul.f32 %v380, 1.442695
    %v415 = vpow.pop %v414
    %v416 = vmul.f32 %v381, 1.442695
    %v417 = vpow.pop %v416
    %v418 = vmul.f32 %v382, 1.442695
    %v419 = vpow.pop %v418
    %v420 = vmul.f32 %v383, 1.442695
    %v421 = vpow.pop %v420
    %v422 = vmul.f32 %v384, 1.442695
    %v423 = vpow.pop %v422
    %v424 = vmul.f32 %v385, 1.442695
    %v425 = vpow.pop %v424
    %v426 = vmul.f32 %v386, 1.442695
    %v427 = vpow.pop %v426
    %v428 = vmul.f32 %v387, 1.442695
    %v429 = vpow.pop %v428
    %v430 = vmul.f32 %v388, 1.442695
    %v431 = vpow.pop %v430
    %v432 = vmul.f32 %v389, 1.442695
    %v433 = vpow.pop %v432
    %v434 = vmul.f32 %v390, 1.442695
    %v435 = vpow.pop %v434
    %v436 = vmul.f32 %v391, 1.442695
    %v437 = vpow.pop %v436
    %v438 = vmul.f32 %v392, 1.442695
    %v439 = vpow.pop %v438
    %v440 = vmul.f32 %v393, 1.442695
    %v441 = vpow.pop %v440
    %v442 = vmul.f32 %v394, 1.442695
    %v443 = vpow.pop %v442
    %v444 = vmul.f32 %v395, 1.442695
    %v445 = vpow.pop %v444
    %v446 = vadd.f32 %v397, 1.0
    %v447 = vadd.f32 %v399, 1.0
    %v448 = vadd.f32 %v401, 1.0
    %v449 = vadd.f32 %v403, 1.0
    %v450 = vadd.f32 %v405, 1.0
    %v451 = vadd.f32 %v407, 1.0
    %v452 = vadd.f32 %v409, 1.0
    %v453 = vadd.f32 %v411, 1.0
    %v454 = vadd.f32 %v413, 1.0
    %v455 = vadd.f32 %v415, 1.0
    %v456 = vadd.f32 %v417, 1.0
    %v457 = vadd.f32 %v419, 1.0
    %v458 = vadd.f32 %v421, 1.0
    %v459 = vadd.f32 %v423, 1.0
    %v460 = vadd.f32 %v425, 1.0
    %v461 = vadd.f32 %v427, 1.0
    %v462 = vadd.f32 %v429, 1.0
    %v463 = vadd.f32 %v431, 1.0
    %v464 = vadd.f32 %v433, 1.0
    %v465 = vadd.f32 %v435, 1.0
    %v466 = vadd.f32 %v437, 1.0
    %v467 = vadd.f32 %v439, 1.0
    %v468 = vadd.f32 %v441, 1.0
    %v469 = vadd.f32 %v443, 1.0
    %v470 = vadd.f32 %v445, 1.0
    %v471 = vrcp.pop %v446
    %v472 = vmul.f32 1.0, %v471
    %v473 = vrcp.pop %v447
    %v474 = vmul.f32 1.0, %v473
    %v475 = vrcp.pop %v448
    %v476 = vmul.f32 1.0, %v475
    %v477 = vrcp.pop %v449
    %v478 = vmul.f32 1.0, %v477
    %v479 = vrcp.pop %v450
    %v480 = vmul.f32 1.0, %v479
    %v481 = vrcp.pop %v451
    %v482 = vmul.f32 1.0, %v481
    %v483 = vrcp.pop %v452
    %v484 = vmul.f32 1.0, %v483
    %v485 = vrcp.pop %v453
    %v486 = vmul.f32 1.0, %v485
    %v487 = vrcp.pop %v454
    %v488 = vmul.f32 1.0, %v487
    %v489 = vrcp.pop %v455
    %v490 = vmul.f32 1.0, %v489
    %v491 = vrcp.pop %v456
    %v492 = vmul.f32 1.0, %v491
    %v493 = vrcp.pop %v457
    %v494 = vmul.f32 1.0, %v493
    %v495 = vrcp.pop %v458
    %v496 = vmul.f32 1.0, %v495
    %v497 = vrcp.pop %v459
    %v498 = vmul.f32 1.0, %v497
    %v499 = vrcp.pop %v460
    %v500 = vmul.f32 1.0, %v499
    %v501 = vrcp.pop %v461
    %v502 = vmul.f32 1.0, %v501
    %v503 = vrcp.pop %v462
    %v504 = vmul.f32 1.0, %v503
    %v505 = vrcp.pop %v463
    %v506 = vmul.f32 1.0, %v505
    %v507 = vrcp.pop %v464
    %v508 = vmul.f32 1.0, %v507
    %v509 = vrcp.pop %v465
    %v510 = vmul.f32 1.0, %v509
    %v511 = vrcp.pop %v466
    %v512 = vmul.f32 1.0, %v511
    %v513 = vrcp.pop %v467
    %v514 = vmul.f32 1.0, %v513
    %v515 = vrcp.pop %v468
    %v516 = vmul.f32 1.0, %v515
    %v517 = vrcp.pop %v469
    %v518 = vmul.f32 1.0, %v517
    %v519 = vrcp.pop %v470
    %v520 = vmul.f32 1.0, %v519
    %v521 = vmul.f32 %v270, %v472
    %v522 = vmul.f32 %v273, %v474
    %v523 = vmul.f32 %v278, %v476
    %v524 = vmul.f32 %v281, %v478
    %v525 = vmul.f32 %v286, %v480
    %v526 = vmul.f32 %v289, %v482
    %v527 = vmul.f32 %v294, %v484
    %v528 = vmul.f32 %v297, %v486
    %v529 = vmul.f32 %v302, %v488
    %v530 = vmul.f32 %v305, %v490
    %v531 = vmul.f32 %v310, %v492
    %v532 = vmul.f32 %v313, %v494
    %v533 = vmul.f32 %v318, %v496
    %v534 = vmul.f32 %v321, %v498
    %v535 = vmul.f32 %v326, %v500
    %v536 = vmul.f32 %v329, %v502
    %v537 = vmul.f32 %v334, %v504
    %v538 = vmul.f32 %v337, %v506
    %v539 = vmul.f32 %v342, %v508
    %v540 = vmul.f32 %v345, %v510
    %v541 = vmul.f32 %v350, %v512
    %v542 = vmul.f32 %v353, %v514
    %v543 = vmul.f32 %v358, %v516
    %v544 = vmul.f32 %v361, %v518
    %v545 = vmul.f32 %v366, %v520
    %v546 = vpack.c.bf16 %v522, %v521
    %v547 = vpack.c.bf16 %v524, %v523
    %v548 = vpack.c.bf16 %v526, %v525
    %v549 = vpack.c.bf16 %v528, %v527
    %v550 = vpack.c.bf16 %v530, %v529
    %v551 = vpack.c.bf16 %v532, %v531
    %v552 = vpack.c.bf16 %v534, %v533
    %v553 = vpack.c.bf16 %v536, %v535
    %v554 = vpack.c.bf16 %v538, %v537
    %v555 = vpack.c.bf16 %v540, %v539
    %v556 = vpack.c.bf16 %v542, %v541
    %v557 = vpack.c.bf16 %v544, %v543
    %v558 = vpack.c.bf16 %v545, %v545
    %v559 = vld [vmem:[#allocation7] sm:$0xf]
    %v560 = vld [vmem:[#allocation7 + $0x4] sm:$0xf]
    %v561 = vld [vmem:[#allocation7 + $0x8] sm:$0xf]
    %v562 = vld [vmem:[#allocation7 + $0xc] sm:$0xf]
    %v563 = vld [vmem:[#allocation7 + $0x10] sm:$0xf]
    %v564 = vld [vmem:[#allocation7 + $0x14] sm:$0xf]
    %v565 = vld [vmem:[#allocation7 + $0x18] sm:$0xf]
    %v566 = vld [vmem:[#allocation7 + $0x1c] sm:$0xf]
    %v567 = vld [vmem:[#allocation7 + $0x20] sm:$0xf]
    %v568 = vld [vmem:[#allocation7 + $0x24] sm:$0xf]
    %v569 = vld [vmem:[#allocation7 + $0x28] sm:$0xf]
    %v570 = vld [vmem:[#allocation7 + $0x2c] sm:$0xf]
    %v571 = vld [vmem:[#allocation7 + $0x30] sm:$0xf]
    %v572 = vld [vmem:[#allocation7 + $0x34] sm:$0xf]
    %v573 = vld [vmem:[#allocation7 + $0x38] sm:$0xf]
    %v574 = vld [vmem:[#allocation7 + $0x3c] sm:$0xf]
    %v575 = vld [vmem:[%s4] sm:$0x1]
    %v577 = vlaneseq
    %v578 = vshrl.u32 %v577, 7
    %v579 = vsub.s32 0, %v578
    %v580 = vrot.slane %v575, %v579
    %v598 = vunpack.c.l.b16 %v559
    %v599 = vunpack.c.l.b16 %v560
    %v600 = vunpack.c.l.b16 %v561
    %v601 = vunpack.c.l.b16 %v562
    %v602 = vunpack.c.l.b16 %v563
    %v603 = vunpack.c.l.b16 %v564
    %v604 = vunpack.c.l.b16 %v565
    %v605 = vunpack.c.l.b16 %v566
    %v606 = vunpack.c.l.b16 %v567
    %v607 = vunpack.c.l.b16 %v568
    %v608 = vunpack.c.l.b16 %v569
    %v609 = vunpack.c.l.b16 %v570
    %v610 = vunpack.c.l.b16 %v571
    %v611 = vunpack.c.l.b16 %v572
    %v612 = vunpack.c.l.b16 %v573
    %v613 = vunpack.c.l.b16 %v574
    %v614 = vpack.c.b16 %v599, %v598
    %v615 = vpack.c.b16 %v601, %v600
    %v616 = vpack.c.b16 %v603, %v602
    %v617 = vpack.c.b16 %v605, %v604
    %v618 = vpack.c.b16 %v607, %v606
    %v619 = vpack.c.b16 %v609, %v608
    %v620 = vpack.c.b16 %v611, %v610
    %v621 = vpack.c.b16 %v613, %v612
    %630 = vmatprep.subr.bf16.mxu0 0
    %631 = vmatpush1.bf16.msra.mxu0 %v621
    %632 = vmatprep.subr.bf16.mxu0 0
    %633 = vmatpush1.bf16.msra.mxu0 %v620
    %634 = vmatprep.subr.bf16.mxu0 0
    %635 = vmatpush1.bf16.msra.mxu0 %v619
    %636 = vmatprep.subr.bf16.mxu0 0
    %637 = vmatpush1.bf16.msra.mxu0 %v618
    %638 = vmatprep.subr.bf16.mxu0 0
    %639 = vmatpush1.bf16.msra.mxu0 %v617
    %640 = vmatprep.subr.bf16.mxu0 0
    %641 = vmatpush1.bf16.msra.mxu0 %v616
    %642 = vmatprep.subr.bf16.mxu0 0
    %643 = vmatpush1.bf16.msra.mxu0 %v615
    %644 = vmatprep.subr.bf16.mxu0 0
    %645 = vmatpush1.bf16.msra.mxu0 %v614
    %646 = vmatprep.subr.bf16.mxu0 0
    %647 = vmatpush2.bf16.msra.mxu0 0
    %648 = vmatprep.subr.bf16.mxu0 0
    %649 = vmatpush2.bf16.msra.mxu0 0
    %650 = vmatprep.subr.bf16.mxu0 0
    %651 = vmatpush2.bf16.msra.mxu0 0
    %652 = vmatprep.subr.bf16.mxu0 0
    %653 = vmatpush2.bf16.msra.mxu0 0
    %654 = vmatprep.subr.bf16.mxu0 0
    %655 = vmatpush2.bf16.msra.mxu0 0
    %656 = vmatprep.subr.bf16.mxu0 0
    %657 = vmatpush2.bf16.msra.mxu0 0
    %658 = vmatprep.subr.bf16.mxu0 0
    %659 = vmatpush2.bf16.msra.mxu0 0
    %660 = vmatprep.subr.bf16.mxu0 0
    %661 = vmatpush2.bf16.msra.mxu0 0
    %662 = vmatprep.mubr.bf16.mxu0 0
    %663 = vmatmul.mubr.bf16.gmra.mxu0 %v546
    %v664 = vpop.f32.mrf.mxu0
    %v665 = vadd.f32 %v580, %v664
    %v666 = vpop.f32.mrf.mxu0
    %v667 = vpop.f32.mrf.mxu0
    %v668 = vadd.f32 %v580, %v667
    %v669 = vpop.f32.mrf.mxu0
    %670 = vmatprep.mubr.bf16.mxu0 0
    %671 = vmatmul.mubr.bf16.gmra.mxu0 %v547
    %v672 = vpop.f32.mrf.mxu0
    %v673 = vadd.f32 %v580, %v672
    %v674 = vpop.f32.mrf.mxu0
    %v675 = vpop.f32.mrf.mxu0
    %v676 = vadd.f32 %v580, %v675
    %v677 = vpop.f32.mrf.mxu0
    %678 = vmatprep.mubr.bf16.mxu0 0
    %679 = vmatmul.mubr.bf16.gmra.mxu0 %v548
    %v680 = vpop.f32.mrf.mxu0
    %v681 = vadd.f32 %v580, %v680
    %v682 = vpop.f32.mrf.mxu0
    %v683 = vpop.f32.mrf.mxu0
    %v684 = vadd.f32 %v580, %v683
    %v685 = vpop.f32.mrf.mxu0
    %686 = vmatprep.mubr.bf16.mxu0 0
    %687 = vmatmul.mubr.bf16.gmra.mxu0 %v549
    %v688 = vpop.f32.mrf.mxu0
    %v689 = vadd.f32 %v580, %v688
    %v690 = vpop.f32.mrf.mxu0
    %v691 = vpop.f32.mrf.mxu0
    %v692 = vadd.f32 %v580, %v691
    %v693 = vpop.f32.mrf.mxu0
    %694 = vmatprep.mubr.bf16.mxu0 0
    %695 = vmatmul.mubr.bf16.gmra.mxu0 %v550
    %v696 = vpop.f32.mrf.mxu0
    %v697 = vadd.f32 %v580, %v696
    %v698 = vpop.f32.mrf.mxu0
    %v699 = vpop.f32.mrf.mxu0
    %v700 = vadd.f32 %v580, %v699
    %v701 = vpop.f32.mrf.mxu0
    %702 = vmatprep.mubr.bf16.mxu0 0
    %703 = vmatmul.mubr.bf16.gmra.mxu0 %v551
    %v704 = vpop.f32.mrf.mxu0
    %v705 = vadd.f32 %v580, %v704
    %v706 = vpop.f32.mrf.mxu0
    %v707 = vpop.f32.mrf.mxu0
    %v708 = vadd.f32 %v580, %v707
    %v709 = vpop.f32.mrf.mxu0
    %710 = vmatprep.mubr.bf16.mxu0 0
    %711 = vmatmul.mubr.bf16.gmra.mxu0 %v552
    %v712 = vpop.f32.mrf.mxu0
    %v713 = vadd.f32 %v580, %v712
    %v714 = vpop.f32.mrf.mxu0
    %v715 = vpop.f32.mrf.mxu0
    %v716 = vadd.f32 %v580, %v715
    %v717 = vpop.f32.mrf.mxu0
    %718 = vmatprep.mubr.bf16.mxu0 0
    %719 = vmatmul.mubr.bf16.gmra.mxu0 %v553
    %v720 = vpop.f32.mrf.mxu0
    %v721 = vadd.f32 %v580, %v720
    %v722 = vpop.f32.mrf.mxu0
    %v723 = vpop.f32.mrf.mxu0
    %v724 = vadd.f32 %v580, %v723
    %v725 = vpop.f32.mrf.mxu0
    %726 = vmatprep.mubr.bf16.mxu0 0
    %727 = vmatmul.mubr.bf16.gmra.mxu0 %v554
    %v728 = vpop.f32.mrf.mxu0
    %v729 = vadd.f32 %v580, %v728
    %v730 = vpop.f32.mrf.mxu0
    %v731 = vpop.f32.mrf.mxu0
    %v732 = vadd.f32 %v580, %v731
    %v733 = vpop.f32.mrf.mxu0
    %734 = vmatprep.mubr.bf16.mxu0 0
    %735 = vmatmul.mubr.bf16.gmra.mxu0 %v555
    %v736 = vpop.f32.mrf.mxu0
    %v737 = vadd.f32 %v580, %v736
    %v738 = vpop.f32.mrf.mxu0
    %v739 = vpop.f32.mrf.mxu0
    %v740 = vadd.f32 %v580, %v739
    %v741 = vpop.f32.mrf.mxu0
    %742 = vmatprep.mubr.bf16.mxu0 0
    %743 = vmatmul.mubr.bf16.gmra.mxu0 %v556
    %v744 = vpop.f32.mrf.mxu0
    %v745 = vadd.f32 %v580, %v744
    %v746 = vpop.f32.mrf.mxu0
    %v747 = vpop.f32.mrf.mxu0
    %v748 = vadd.f32 %v580, %v747
    %v749 = vpop.f32.mrf.mxu0
    %750 = vmatprep.mubr.bf16.mxu0 0
    %751 = vmatmul.mubr.bf16.gmra.mxu0 %v557
    %v752 = vpop.f32.mrf.mxu0
    %v753 = vadd.f32 %v580, %v752
    %v754 = vpop.f32.mrf.mxu0
    %v755 = vpop.f32.mrf.mxu0
    %v756 = vadd.f32 %v580, %v755
    %v757 = vpop.f32.mrf.mxu0
    %758 = vmatprep.mubr.bf16.mxu0 0
    %759 = vmatmul.mubr.bf16.gmra.mxu0 %v558
    %v760 = vpop.f32.mrf.mxu0
    %v761 = vadd.f32 %v580, %v760
    %v762 = vpop.f32.mrf.mxu0
    %v763 = vpop.f32.mrf.mxu0
    %v764 = vpop.f32.mrf.mxu0
    %765 = vdwg.mxu0
    %v766 = vpack.c.bf16 %v668, %v665
    %v767 = vpack.c.bf16 %v676, %v673
    %v768 = vpack.c.bf16 %v684, %v681
    %v769 = vpack.c.bf16 %v692, %v689
    %v770 = vpack.c.bf16 %v700, %v697
    %v771 = vpack.c.bf16 %v708, %v705
    %v772 = vpack.c.bf16 %v716, %v713
    %v773 = vpack.c.bf16 %v724, %v721
    %v774 = vpack.c.bf16 %v732, %v729
    %v775 = vpack.c.bf16 %v740, %v737
    %v776 = vpack.c.bf16 %v748, %v745
    %v777 = vpack.c.bf16 %v756, %v753
    %v778 = vpack.c.bf16 %v761, %v761
    %v792 = vunpack.c.l.b16 %v766
    %v793 = vunpack.c.h.b16 %v766
    %v794 = vunpack.c.l.b16 %v767
    %v795 = vunpack.c.h.b16 %v767
    %v796 = vunpack.c.l.b16 %v768
    %v797 = vunpack.c.h.b16 %v768
    %v798 = vunpack.c.l.b16 %v769
    %v799 = vunpack.c.h.b16 %v769
    %v800 = vunpack.c.l.b16 %v770
    %v801 = vunpack.c.h.b16 %v770
    %v802 = vunpack.c.l.b16 %v771
    %v803 = vunpack.c.h.b16 %v771
    %v804 = vunpack.c.l.b16 %v772
    %v805 = vunpack.c.h.b16 %v772
    %v806 = vunpack.c.l.b16 %v773
    %v807 = vunpack.c.h.b16 %v773
    %v808 = vunpack.c.l.b16 %v774
    %v809 = vunpack.c.h.b16 %v774
    %v810 = vunpack.c.l.b16 %v775
    %v811 = vunpack.c.h.b16 %v775
    %v812 = vunpack.c.l.b16 %v776
    %v813 = vunpack.c.h.b16 %v776
    %v814 = vunpack.c.l.b16 %v777
    %v815 = vunpack.c.h.b16 %v777
    %v816 = vunpack.c.l.b16 %v778
    %v817 = vpack.c.b16 %v792, %v792
    %v818 = vpack.c.b16 %v793, %v793
    %v819 = vpack.c.b16 %v794, %v794
    %v820 = vpack.c.b16 %v795, %v795
    %v821 = vpack.c.b16 %v796, %v796
    %v822 = vpack.c.b16 %v797, %v797
    %v823 = vpack.c.b16 %v798, %v798
    %v824 = vpack.c.b16 %v799, %v799
    %v825 = vpack.c.b16 %v800, %v800
    %v826 = vpack.c.b16 %v801, %v801
    %v827 = vpack.c.b16 %v802, %v802
    %v828 = vpack.c.b16 %v803, %v803
    %v829 = vpack.c.b16 %v804, %v804
    %v830 = vpack.c.b16 %v805, %v805
    %v831 = vpack.c.b16 %v806, %v806
    %v832 = vpack.c.b16 %v807, %v807
    %v833 = vpack.c.b16 %v808, %v808
    %v834 = vpack.c.b16 %v809, %v809
    %v835 = vpack.c.b16 %v810, %v810
    %v836 = vpack.c.b16 %v811, %v811
    %v837 = vpack.c.b16 %v812, %v812
    %v838 = vpack.c.b16 %v813, %v813
    %v839 = vpack.c.b16 %v814, %v814
    %v840 = vpack.c.b16 %v815, %v815
    %v841 = vpack.c.b16 %v816, %v816
    %867 = vst [vmem:[#allocation8] sm:$0xf] %v817
    %868 = vst [vmem:[#allocation8 + $0x4] sm:$0xf] %v818
    %869 = vst [vmem:[#allocation8 + $0x8] sm:$0xf] %v819
    %870 = vst [vmem:[#allocation8 + $0xc] sm:$0xf] %v820
    %871 = vst [vmem:[#allocation8 + $0x10] sm:$0xf] %v821
    %872 = vst [vmem:[#allocation8 + $0x14] sm:$0xf] %v822
    %873 = vst [vmem:[#allocation8 + $0x18] sm:$0xf] %v823
    %874 = vst [vmem:[#allocation8 + $0x1c] sm:$0xf] %v824
    %875 = vst [vmem:[#allocation8 + $0x20] sm:$0xf] %v825
    %876 = vst [vmem:[#allocation8 + $0x24] sm:$0xf] %v826
    %877 = vst [vmem:[#allocation8 + $0x28] sm:$0xf] %v827
    %878 = vst [vmem:[#allocation8 + $0x2c] sm:$0xf] %v828
    %879 = vst [vmem:[#allocation8 + $0x30] sm:$0xf] %v829
    %880 = vst [vmem:[#allocation8 + $0x34] sm:$0xf] %v830
    %881 = vst [vmem:[#allocation8 + $0x38] sm:$0xf] %v831
    %882 = vst [vmem:[#allocation8 + $0x3c] sm:$0xf] %v832
    %883 = vst [vmem:[#allocation8 + $0x40] sm:$0xf] %v833
    %884 = vst [vmem:[#allocation8 + $0x44] sm:$0xf] %v834
    %885 = vst [vmem:[#allocation8 + $0x48] sm:$0xf] %v835
    %886 = vst [vmem:[#allocation8 + $0x4c] sm:$0xf] %v836
    %887 = vst [vmem:[#allocation8 + $0x50] sm:$0xf] %v837
    %888 = vst [vmem:[#allocation8 + $0x54] sm:$0xf] %v838
    %889 = vst [vmem:[#allocation8 + $0x58] sm:$0xf] %v839
    %890 = vst [vmem:[#allocation8 + $0x5c] sm:$0xf] %v840
    %891 = vst [vmem:[#allocation8 + $0x60] sm:$0xf] %v841
    // Predicated region
    $region34: #{tpu_custom_call.1} parent=1 // pred_check
      _
    $region35: #{tpu_custom_call.1} parent=1 // pred_check_branch
      %893 = sbr.rel (0) target = $region37
    $region36: #{tpu_custom_call.1} parent=1 // pred_region
      %s895 = ssub.s32 1600, 1600
      %896 = vsyncadd [#allocation4], %s895
      %s897 = sshll.u32 [#allocation8], 4
      %s898 = int_to_ptr.vmem [resolvable:$true] %s897
      %903 = dma.vmem_to_hbm [thread:$0]  %s898, 1600, %s5, [#allocation4], 64, 64, 4
    $region37: #{tpu_custom_call.1} parent=1 // pred_fallthru
      _
    // Predicated region
    $region38: #{tpu_custom_call.1} parent=1 // pred_check
      _
    $region39: #{tpu_custom_call.1} parent=1 // pred_check_branch
      %905 = sbr.rel (0) target = $region41
    $region40: #{tpu_custom_call.1} parent=1 // pred_region
      %906 = dma.done [#allocation4], 1600
    $region41: #{tpu_custom_call.1} parent=1 // pred_fallthru
      _
    %907 = vsyncpa [#allocation3], 1
    %908 = vsyncpa [#allocation6], 1
    %909 = vsyncpa [#allocation4], 1

</llo_original>
